<compile_context>
chip_gen: v5e
topology: v5e:2x2
jax: 0.10.0
libtpu: 0.0.40
codegen_flags: <defaults>
</compile_context>

<pallas_src>
import jax
import jax.numpy as jnp
from jax.experimental import pallas as pl
from jax.experimental.pallas import tpu as pltpu


# ----------------------------------------------------------------------------
# Fused single-kernel path: A_hat resident in VMEM, grid = (phase, row_tile)
# ----------------------------------------------------------------------------
def gcn_fused_kernel(a_hbm, xw1_ref, b1_ref, w2_ref, b2_ref, out_ref,
                     a_vmem, h_vmem, sem):
    phase = pl.program_id(0)
    i = pl.program_id(1)
    tm = out_ref.shape[0]

    @pl.when(jnp.logical_and(phase == 0, i == 0))
    def _():
        # One-time DMA of the whole padded A_hat into VMEM (HBM read once).
        cp = pltpu.make_async_copy(a_hbm, a_vmem, sem)
        cp.start()
        cp.wait()

    row0 = pl.multiple_of(i * tm, tm)

    @pl.when(phase == 0)
    def _():
        # H[i] = relu(A[i,:] @ (X W1) + b1)
        a_rows = a_vmem[pl.ds(row0, tm), :]                     # (tm, n_pad) bf16
        agg = jnp.dot(a_rows, xw1_ref[...],
                      preferred_element_type=jnp.float32)       # (tm, 16) f32
        h = jnp.maximum(agg + b1_ref[...], 0.0)
        # dropout: F.dropout(x, training=self.training) -> identity in eval.
        # TODO(synk): training-mode dropout via pltpu.prng_random_bits.
        h_vmem[pl.ds(row0, tm), :] = h.astype(h_vmem.dtype)

    @pl.when(phase == 1)
    def _():
        # logits[i] = (A[i,:] @ H) @ W2 + b2 ; out = log_softmax(logits)
        a_rows = a_vmem[pl.ds(row0, tm), :]
        agg = jnp.dot(a_rows, h_vmem[...],
                      preferred_element_type=jnp.float32)       # (tm, 16) f32
        logits = jnp.dot(agg.astype(jnp.bfloat16), w2_ref[...],
                         preferred_element_type=jnp.float32) + b2_ref[...]
        # 2-class log-softmax from explicit column slices.
        c0 = logits[:, 0:1]
        c1 = logits[:, 1:2]
        m = jnp.maximum(c0, c1)
        lse = m + jnp.log(jnp.exp(c0 - m) + jnp.exp(c1 - m))
        out_ref[...] = logits - lse          # lane-dense (tm, 128) f32 store


# ----------------------------------------------------------------------------
# Tiled two-pass path (large graphs)
# ----------------------------------------------------------------------------
def gcn_layer1_kernel(a_ref, xw1_ref, b1_ref, h_ref, acc_ref):
    k = pl.program_id(1)

    @pl.when(k == 0)
    def _():
        acc_ref[...] = jnp.zeros_like(acc_ref)

    # bf16 x bf16 -> f32 MXU accumulation of A @ (X W1).
    acc_ref[...] += jnp.dot(a_ref[...], xw1_ref[...],
                            preferred_element_type=jnp.float32)

    @pl.when(k == pl.num_programs(1) - 1)
    def _():
        h = jnp.maximum(acc_ref[...] + b1_ref[...], 0.0)
        # dropout: identity in eval mode.
        h_ref[...] = h.astype(h_ref.dtype)           # width-16 bf16 intermediate


def gcn_layer2_kernel(a_ref, h_ref, w2_ref, b2_ref, out_ref, acc_ref):
    k = pl.program_id(1)

    @pl.when(k == 0)
    def _():
        acc_ref[...] = jnp.zeros_like(acc_ref)

    acc_ref[...] += jnp.dot(a_ref[...], h_ref[...],
                            preferred_element_type=jnp.float32)

    @pl.when(k == pl.num_programs(1) - 1)
    def _():
        logits = jnp.dot(acc_ref[...].astype(jnp.bfloat16), w2_ref[...],
                         preferred_element_type=jnp.float32) + b2_ref[...]
        c0 = logits[:, 0:1]
        c1 = logits[:, 1:2]
        m = jnp.maximum(c0, c1)
        lse = m + jnp.log(jnp.exp(c0 - m) + jnp.exp(c1 - m))
        out_ref[...] = logits - lse                  # lane-dense 128-wide store


# ----------------------------------------------------------------------------
# Wrapper
# ----------------------------------------------------------------------------
def gcn_forward(a_hat, x, w1, b1, w2, b2, *, tm=256, tk=512,
                fuse_threshold=2048, force_tiled=False):
    """Forward pass of the 2-layer GCN.

    a_hat: (N, N) f32 normalized adjacency.  For large graphs raise tm/tk
    (e.g. tm=512, tk=1024-2048); keep n_pad//tm >= 2 so the `parallel` row axis
    can shard across v7x megacores on the tiled path.
    """
    n, f = x.shape
    hdim = w1.shape[1]
    c = w2.shape[1]
    assert c == 2, "log-softmax epilogue is specialized for 2 classes"
    assert tk % tm == 0, "tk must be a multiple of tm (padding = max(tm, tk))"

    nc = 128   # lane-dense class dim for the final output

    # Parameters: class dim zero-padded to 128; epilogue matmul operands bf16.
    w2p = jnp.zeros((hdim, nc), jnp.bfloat16).at[:, :c].set(w2.astype(jnp.bfloat16))
    b2p = jnp.zeros((1, nc), jnp.float32).at[:, :c].set(b2.reshape(1, c))
    b1r = b1.reshape(1, hdim).astype(jnp.float32)

    # Precompute X @ W1 in the wrapper (O(N*F*H), negligible) -> bf16.
    xw1 = jnp.dot(x, w1, precision=jax.lax.Precision.HIGHEST).astype(jnp.bfloat16)

    def pad_rows(arr, n_pad):
        return jnp.zeros((n_pad,) + arr.shape[1:], arr.dtype).at[:n].set(arr)

    # --------------------- fused single-kernel path -------------------------
    n_pad_f = tm * ((n + tm - 1) // tm)
    if (not force_tiled) and n_pad_f <= fuse_threshold:
        n_pad = n_pad_f
        nt = n_pad // tm
        # Padded rows/cols of A are zero so padded-row garbage in H never
        # reaches real outputs (keep this invariant!).
        a_p = jnp.zeros((n_pad, n_pad), jnp.bfloat16).at[:n, :n].set(
            a_hat.astype(jnp.bfloat16))
        xw1_p = pad_rows(xw1, n_pad)
        a_bytes = n_pad * n_pad * 2

        out_padded = pl.pallas_call(
            gcn_fused_kernel,
            out_shape=jax.ShapeDtypeStruct((n_pad, nc), jnp.float32),
            grid_spec=pltpu.PrefetchScalarGridSpec(
                num_scalar_prefetch=0,
                grid=(2, nt),                                    # (phase, row tile)
                in_specs=[
                    pl.BlockSpec(memory_space=pl.ANY),               # A_hat (HBM)
                    pl.BlockSpec((n_pad, hdim), lambda p, i: (0, 0)),  # X @ W1
                    pl.BlockSpec((1, hdim), lambda p, i: (0, 0)),      # b1
                    pl.BlockSpec((hdim, nc), lambda p, i: (0, 0)),     # W2 padded
                    pl.BlockSpec((1, nc), lambda p, i: (0, 0)),        # b2 padded
                ],
                # Phase 0 never writes the output; pin its block index at 0 so
                # no unwritten output buffer is ever flushed to HBM.
                out_specs=pl.BlockSpec((tm, nc), lambda p, i: (i * p, 0)),
                scratch_shapes=[
                    pltpu.VMEM((n_pad, n_pad), jnp.bfloat16),    # resident A_hat
                    pltpu.VMEM((n_pad, hdim), jnp.bfloat16),     # resident H
                    pltpu.SemaphoreType.DMA,
                ],
            ),
            compiler_params=pltpu.CompilerParams(
                # Phase 1 depends on ALL of phase 0 through the H scratch, so
                # both axes must stay sequential (no megacore on this path).
                dimension_semantics=("arbitrary", "arbitrary"),
                vmem_limit_bytes=min(100 << 20,
                                     max(32 << 20, a_bytes + (16 << 20))),
            ),
        )(a_p, xw1_p, b1r, w2p, b2p)
        return out_padded[:n, :c]

    # --------------------------- tiled two-pass path ------------------------
    n_pad = tk * ((n + tk - 1) // tk)
    grid = (n_pad // tm, n_pad // tk)
    a_p = jnp.zeros((n_pad, n_pad), jnp.bfloat16).at[:n, :n].set(
        a_hat.astype(jnp.bfloat16))
    xw1_p = pad_rows(xw1, n_pad)

    cparams = pltpu.CompilerParams(
        dimension_semantics=("parallel", "arbitrary"),
        vmem_limit_bytes=min(100 << 20, max(32 << 20, 4 * tm * tk + (8 << 20))),
    )

    # Pass 1: H = relu(A_hat @ (X W1) + b1)   (width-16 bf16 intermediate)
    h_mat = pl.pallas_call(
        gcn_layer1_kernel,
        out_shape=jax.ShapeDtypeStruct((n_pad, hdim), jnp.bfloat16),
        grid_spec=pltpu.PrefetchScalarGridSpec(
            num_scalar_prefetch=0,
            grid=grid,
            in_specs=[
                pl.BlockSpec((tm, tk), lambda i, k: (i, k)),     # A_hat tile
                pl.BlockSpec((tk, hdim), lambda i, k: (k, 0)),   # (X W1) k-tile
                pl.BlockSpec((1, hdim), lambda i, k: (0, 0)),    # b1
            ],
            out_specs=pl.BlockSpec((tm, hdim), lambda i, k: (i, 0)),
            scratch_shapes=[pltpu.VMEM((tm, hdim), jnp.float32)],
        ),
        compiler_params=cparams,
    )(a_p, xw1_p, b1r)

    # Pass 2: out = log_softmax((A_hat @ H) @ W2 + b2)
    out_padded = pl.pallas_call(
        gcn_layer2_kernel,
        out_shape=jax.ShapeDtypeStruct((n_pad, nc), jnp.float32),
        grid_spec=pltpu.PrefetchScalarGridSpec(
            num_scalar_prefetch=0,
            grid=grid,
            in_specs=[
                pl.BlockSpec((tm, tk), lambda i, k: (i, k)),     # A_hat tile
                pl.BlockSpec((tk, hdim), lambda i, k: (k, 0)),   # H k-tile
                pl.BlockSpec((hdim, nc), lambda i, k: (0, 0)),   # W2 padded
                pl.BlockSpec((1, nc), lambda i, k: (0, 0)),      # b2 padded
            ],
            out_specs=pl.BlockSpec((tm, nc), lambda i, k: (i, 0)),
            scratch_shapes=[pltpu.VMEM((tm, hdim), jnp.float32)],
        ),
        compiler_params=cparams,
    )(a_p, h_mat, w2p, b2p)

    return out_padded[:n, :c]


# ----------------------------------------------------------------------------
# Glue: normalized adjacency, init, plain-JAX reference
# ----------------------------------------------------------------------------
def build_normalized_adjacency(edge_index, num_nodes):
    """Dense D^{-1/2} (A + I) D^{-1/2} from a (2, E) int edge_index."""
    src, dst = edge_index[0], edge_index[1]
    a = jnp.zeros((num_nodes, num_nodes), jnp.float32)
    a = a.at[dst, src].add(1.0)                      # message src -> dst
    a = a + jnp.eye(num_nodes, dtype=jnp.float32)    # self-loops
    deg = jnp.sum(a, axis=1)
    d_inv_sqrt = jnp.where(deg > 0, 1.0 / jnp.sqrt(deg), 0.0)
    return d_inv_sqrt[:, None] * a * d_inv_sqrt[None, :]


def glorot(key, shape):
    fan_in, fan_out = shape
    limit = jnp.sqrt(6.0 / (fan_in + fan_out))
    return jax.random.uniform(key, shape, jnp.float32, -limit, limit)


def gcn_reference(a_hat, x, w1, b1, w2, b2):
    """Pure-JAX reference mirroring the kernels' precision choices."""
    hp = jax.lax.Precision.HIGHEST
    f32 = lambda v: v.astype(jnp.float32)
    bf = lambda v: v.astype(jnp.bfloat16)
    a = f32(bf(a_hat))
    xw1 = f32(bf(jnp.dot(x, w1, precision=hp)))
    h = jnp.maximum(jnp.dot(a, xw1, precision=hp) + b1.reshape(1, -1), 0.0)
    h = f32(bf(h))                                       # H carried as bf16
    agg2 = jnp.dot(a, h, precision=hp)
    logits = (jnp.dot(f32(bf(agg2)), f32(bf(w2)), precision=hp)
              + b2.reshape(1, -1))
    return jax.nn.log_softmax(logits, axis=1)


if __name__ == "__main__":
    key = jax.random.PRNGKey(0)
    k_x, k_e, k_w1, k_b1, k_w2, k_b2 = jax.random.split(key, 6)

    num_nodes = 300    # N (graph nodes); pads to 512 -> 2 row tiles
    num_feat = 8       # data.num_features
    hidden = 16        # conv1 output width
    num_classes = 2    # conv2 output width

    # deterministic node features
    x = jax.random.normal(k_x, (num_nodes, num_feat), jnp.float32)

    # deterministic synthetic edge_index (2, E): a ring + random chords
    ring_src = jnp.arange(num_nodes, dtype=jnp.int32)
    ring_dst = (ring_src + 1) % num_nodes
    rand_src = jax.random.randint(k_e, (4 * num_nodes,), 0, num_nodes, jnp.int32)
    rand_dst = (rand_src + 7) % num_nodes
    edge_index = jnp.stack(
        [jnp.concatenate([ring_src, rand_src]),
         jnp.concatenate([ring_dst, rand_dst])], axis=0)

    a_hat = build_normalized_adjacency(edge_index, num_nodes)

    # deterministic parameters (GCNConv: weight [in, out], bias [out])
    w1 = glorot(k_w1, (num_feat, hidden))
    b1 = 0.1 * jax.random.normal(k_b1, (1, hidden), jnp.float32)
    w2 = glorot(k_w2, (hidden, num_classes))
    b2 = 0.1 * jax.random.normal(k_b2, (1, num_classes), jnp.float32)

    ref = gcn_reference(a_hat, x, w1, b1, w2, b2)

    # Fused single-kernel path (default for small/medium graphs).
    out_fused = jax.block_until_ready(gcn_forward(a_hat, x, w1, b1, w2, b2))
    # Tiled two-pass path (large-graph fallback), exercised explicitly.
    out_tiled = jax.block_until_ready(
        gcn_forward(a_hat, x, w1, b1, w2, b2, force_tiled=True, tm=256, tk=256))

    for out in (out_fused, out_tiled):
        assert out.shape == (num_nodes, num_classes)
        # log_softmax rows must sum (in prob space) to 1
        assert bool(jnp.allclose(jnp.sum(jnp.exp(out), axis=1), 1.0, atol=1e-5))
        # match the pure-JAX reference (same bf16 intermediate precision)
        assert bool(jnp.allclose(out, ref, atol=2e-2, rtol=0.0))
    # both kernel paths agree with each other
    assert bool(jnp.allclose(out_fused, out_tiled, atol=2e-2, rtol=0.0))
    print("KERNEL_OK")
</pallas_src>

<mosaic_0001>
module attributes {stable_mosaic.version = 11 : i64} {
  func.func @gcn_fused_kernel(%arg0: i32, %arg1: i32, %arg2: memref<512x512xbf16, #tpu.memory_space<any>>, %arg3: memref<512x16xbf16, #tpu.memory_space<vmem>>, %arg4: memref<1x16xf32, #tpu.memory_space<vmem>>, %arg5: memref<16x128xbf16, #tpu.memory_space<vmem>>, %arg6: memref<1x128xf32, #tpu.memory_space<vmem>>, %arg7: memref<256x128xf32, #tpu.memory_space<vmem>>, %arg8: memref<512x512xbf16, #tpu.memory_space<vmem>>, %arg9: memref<512x16xbf16, #tpu.memory_space<vmem>>, %arg10: memref<!tpu.dma_semaphore, #tpu.memory_space<semaphore_mem>>) attributes {dimension_semantics = [#tpu.dimension_semantics<arbitrary>, #tpu.dimension_semantics<arbitrary>], iteration_bounds = array<i64: 2, 2>, scalar_prefetch = 0 : i64, scratch_operands = 3 : i64, tpu.core_type = #tpu.core_type<tc>, window_params = [{}, {pipeline_mode = #tpu.pipeline_mode<synchronous>, transform_indices = @transform_1, window_bounds = array<i64: 512, 16>}, {pipeline_mode = #tpu.pipeline_mode<synchronous>, transform_indices = @transform_2, window_bounds = array<i64: 1, 16>}, {pipeline_mode = #tpu.pipeline_mode<synchronous>, transform_indices = @transform_3, window_bounds = array<i64: 16, 128>}, {pipeline_mode = #tpu.pipeline_mode<synchronous>, transform_indices = @transform_4, window_bounds = array<i64: 1, 128>}, {transform_indices = @transform_5, window_bounds = array<i64: 256, 128>}]} {
    %c0_i32 = arith.constant 0 : i32
    %0 = arith.cmpi eq, %arg0, %c0_i32 : i32
    %c0_i32_0 = arith.constant 0 : i32
    %1 = arith.cmpi eq, %arg1, %c0_i32_0 : i32
    %2 = arith.andi %0, %1 : i1
    %3 = arith.extui %2 : i1 to i32
    %c0_i32_1 = arith.constant 0 : i32
    %4 = arith.cmpi ne, %3, %c0_i32_1 : i32
    scf.if %4 {
      tpu.enqueue_dma source(%arg2 : memref<512x512xbf16, #tpu.memory_space<any>>) target(%arg8 : memref<512x512xbf16, #tpu.memory_space<vmem>>) target_semaphore(%arg10 : memref<!tpu.dma_semaphore, #tpu.memory_space<semaphore_mem>>)
      tpu.wait_dma2 semaphore(%arg10 : memref<!tpu.dma_semaphore, #tpu.memory_space<semaphore_mem>>) src(%arg2 : memref<512x512xbf16, #tpu.memory_space<any>>) dst(%arg8 : memref<512x512xbf16, #tpu.memory_space<vmem>>)
    } else {
    }
    %c256_i32 = arith.constant 256 : i32
    %5 = arith.muli %arg1, %c256_i32 : i32
    %6 = tpu.assume_multiple %5, 256 : i32
    %c0_i32_2 = arith.constant 0 : i32
    %7 = arith.cmpi eq, %arg0, %c0_i32_2 : i32
    %8 = arith.extui %7 : i1 to i32
    %c0_i32_3 = arith.constant 0 : i32
    %9 = arith.cmpi ne, %8, %c0_i32_3 : i32
    scf.if %9 {
      %13 = arith.index_cast %6 : i32 to index
      %c0 = arith.constant 0 : index
      %14 = vector.load %arg8[%13, %c0] : memref<512x512xbf16, #tpu.memory_space<vmem>>, vector<256x512xbf16>
      %c0_5 = arith.constant 0 : index
      %c0_6 = arith.constant 0 : index
      %15 = vector.load %arg3[%c0_5, %c0_6] : memref<512x16xbf16, #tpu.memory_space<vmem>>, vector<512x16xbf16>
      %cst = arith.constant dense<0.000000e+00> : vector<256x16xf32>
      %16 = tpu.matmul %14, %15, %cst {dimension_numbers = #tpu.dot_dimension_numbers<[1], [0], [0], [1], [0, 0, 1, 1], [], []>} : vector<256x512xbf16>, vector<512x16xbf16>, vector<256x16xf32> -> vector<256x16xf32>
      %c0_7 = arith.constant 0 : index
      %c0_8 = arith.constant 0 : index
      %17 = vector.load %arg4[%c0_7, %c0_8] : memref<1x16xf32, #tpu.memory_space<vmem>>, vector<1x16xf32>
      %18 = vector.broadcast %17 : vector<1x16xf32> to vector<256x16xf32>
      %19 = arith.addf %16, %18 : vector<256x16xf32>
      %cst_9 = arith.constant 0.000000e+00 : f32
      %20 = vector.broadcast %cst_9 : f32 to vector<256x16xf32>
      %21 = arith.maximumf %19, %20 : vector<256x16xf32>
      %22 = arith.truncf %21 : vector<256x16xf32> to vector<256x16xbf16>
      %23 = arith.index_cast %6 : i32 to index
      %c0_10 = arith.constant 0 : index
      %24 = vector.load %arg9[%23, %c0_10] : memref<512x16xbf16, #tpu.memory_space<vmem>>, vector<256x16xbf16>
      tpu.vector_store %arg9[%23, %c0_10], %22 {strides = array<i32>} : memref<512x16xbf16, #tpu.memory_space<vmem>>, vector<256x16xbf16>,
    } else {
    }
    %c1_i32 = arith.constant 1 : i32
    %10 = arith.cmpi eq, %arg0, %c1_i32 : i32
    %11 = arith.extui %10 : i1 to i32
    %c0_i32_4 = arith.constant 0 : i32
    %12 = arith.cmpi ne, %11, %c0_i32_4 : i32
    scf.if %12 {
      %13 = arith.index_cast %6 : i32 to index
      %c0 = arith.constant 0 : index
      %14 = vector.load %arg8[%13, %c0] : memref<512x512xbf16, #tpu.memory_space<vmem>>, vector<256x512xbf16>
      %c0_5 = arith.constant 0 : index
      %c0_6 = arith.constant 0 : index
      %15 = vector.load %arg9[%c0_5, %c0_6] : memref<512x16xbf16, #tpu.memory_space<vmem>>, vector<512x16xbf16>
      %cst = arith.constant dense<0.000000e+00> : vector<256x16xf32>
      %16 = tpu.matmul %14, %15, %cst {dimension_numbers = #tpu.dot_dimension_numbers<[1], [0], [0], [1], [0, 0, 1, 1], [], []>} : vector<256x512xbf16>, vector<512x16xbf16>, vector<256x16xf32> -> vector<256x16xf32>
      %17 = arith.truncf %16 : vector<256x16xf32> to vector<256x16xbf16>
      %c0_7 = arith.constant 0 : index
      %c0_8 = arith.constant 0 : index
      %18 = vector.load %arg5[%c0_7, %c0_8] : memref<16x128xbf16, #tpu.memory_space<vmem>>, vector<16x128xbf16>
      %cst_9 = arith.constant dense<0.000000e+00> : vector<256x128xf32>
      %19 = tpu.matmul %17, %18, %cst_9 {dimension_numbers = #tpu.dot_dimension_numbers<[1], [0], [0], [1], [0, 0, 1, 1], [], []>} : vector<256x16xbf16>, vector<16x128xbf16>, vector<256x128xf32> -> vector<256x128xf32>
      %c0_10 = arith.constant 0 : index
      %c0_11 = arith.constant 0 : index
      %20 = vector.load %arg6[%c0_10, %c0_11] : memref<1x128xf32, #tpu.memory_space<vmem>>, vector<1x128xf32>
      %21 = vector.broadcast %20 : vector<1x128xf32> to vector<256x128xf32>
      %22 = arith.addf %19, %21 : vector<256x128xf32>
      %23 = vector.extract_strided_slice %22 {offsets = [0, 0], sizes = [256, 1], strides = [1, 1]} : vector<256x128xf32> to vector<256x1xf32>
      %24 = vector.extract_strided_slice %22 {offsets = [0, 1], sizes = [256, 1], strides = [1, 1]} : vector<256x128xf32> to vector<256x1xf32>
      %25 = arith.maximumf %23, %24 : vector<256x1xf32>
      %26 = arith.subf %23, %25 : vector<256x1xf32>
      %27 = math.exp %26 : vector<256x1xf32>
      %28 = arith.subf %24, %25 : vector<256x1xf32>
      %29 = math.exp %28 : vector<256x1xf32>
      %30 = arith.addf %27, %29 : vector<256x1xf32>
      %31 = math.log %30 : vector<256x1xf32>
      %32 = arith.addf %25, %31 : vector<256x1xf32>
      %33 = vector.broadcast %32 : vector<256x1xf32> to vector<256x128xf32>
      %34 = arith.subf %22, %33 : vector<256x128xf32>
      %c0_12 = arith.constant 0 : index
      %c0_13 = arith.constant 0 : index
      %35 = vector.load %arg7[%c0_12, %c0_13] : memref<256x128xf32, #tpu.memory_space<vmem>>, vector<256x128xf32>
      tpu.vector_store %arg7[%c0_12, %c0_13], %34 {strides = array<i32>} : memref<256x128xf32, #tpu.memory_space<vmem>>, vector<256x128xf32>,
    } else {
    }
    return
  }
  func.func @transform_1(%arg0: i32, %arg1: i32) -> (i32, i32) {
    %c0_i32 = arith.constant 0 : i32
    %c0_i32_0 = arith.constant 0 : i32
    %c0_i32_1 = arith.constant 0 : i32
    return %c0_i32, %c0_i32_0 : i32, i32
  }
  func.func @transform_2(%arg0: i32, %arg1: i32) -> (i32, i32) {
    %c0_i32 = arith.constant 0 : i32
    %c0_i32_0 = arith.constant 0 : i32
    %c0_i32_1 = arith.constant 0 : i32
    return %c0_i32, %c0_i32_0 : i32, i32
  }
  func.func @transform_3(%arg0: i32, %arg1: i32) -> (i32, i32) {
    %c0_i32 = arith.constant 0 : i32
    %c0_i32_0 = arith.constant 0 : i32
    %c0_i32_1 = arith.constant 0 : i32
    return %c0_i32, %c0_i32_0 : i32, i32
  }
  func.func @transform_4(%arg0: i32, %arg1: i32) -> (i32, i32) {
    %c0_i32 = arith.constant 0 : i32
    %c0_i32_0 = arith.constant 0 : i32
    %c0_i32_1 = arith.constant 0 : i32
    return %c0_i32, %c0_i32_0 : i32, i32
  }
  func.func @transform_5(%arg0: i32, %arg1: i32) -> (i32, i32) {
    %0 = arith.muli %arg1, %arg0 : i32
    %c0_i32 = arith.constant 0 : i32
    %c0_i32_0 = arith.constant 0 : i32
    return %0, %c0_i32 : i32, i32
  }
}

</mosaic_0001>

<llo_original>
// kernel: tpu_custom_call.1
$region0: #{tpu_custom_call.1}
  #allocation0 [shape = 'u32[]', space=smem, size = 0x4, offset = 0x4, fixed_abs, tag = 'smem constant byte address 0x4 - core index']
  #allocation1 [shape = 'u32[72,128]{1,0:T(1,128)}', space=vmem, size = 0x9000, scoped, tag = 'internal scratch']
  #allocation2 [shape = 'bf16[512,512]{1,0:T(8,128)(2,1)}', space=vmem, size = 0x80000, scoped, tag = 'scratch operand']
  #allocation3 [shape = 'bf16[512,16]{1,0:T(8,128)(2,1)}', space=vmem, size = 0x20000, scoped, tag = 'scratch operand']
  #allocation4 [shape = 's32[1]{0}', space=sflag, size = 0x4, scoped, tag = 'scratch operand']
  #allocation7 [shape = 's32[]', space=sflag, size = 0x4, offset = 0, fixed_abs, tag = 'sflag constant byte address 0x0 - dummy sync flag']
  #allocation8 [shape = 's32[]', space=sflag, size = 0x4, offset = 0, fixed_abs, tag = 'sflag constant byte address 0x0 - dummy sync flag']
  #allocation9 [shape = 'u32[]', space=smem, size = 0x4, offset = 0x44, fixed_abs, tag = 'smem constant byte address 0x44 - assertion arg 0']
  #allocation10 [shape = 'u32[]', space=smem, size = 0x4, offset = 0x48, fixed_abs, tag = 'smem constant byte address 0x48 - assertion arg 1']
  %s0 = inlined_call_operand.hbm [shape: bf16[512,512], index: 0, kind: input, shape index: {}]
  %s1 = inlined_call_operand.vmem [shape: bf16[512,16], index: 1, kind: input, shape index: {}]
  %s2 = inlined_call_operand.vmem [shape: f32[1,16], index: 2, kind: input, shape index: {}]
  %s3 = inlined_call_operand.vmem [shape: bf16[16,128], index: 3, kind: input, shape index: {}]
  %s4 = inlined_call_operand.vmem [shape: f32[1,128], index: 4, kind: input, shape index: {}]
  %s5 = inlined_call_operand.hbm [shape: f32[512,128], index: 5, kind: output, shape index: {}]
  %s6 = sld [smem:[#allocation0]]
  $region65: #{tpu_custom_call.1} parent=0
    _
  %s8 = ssub.s32 1, %s6
  %s9 = scalar_select 0, %s8, %s6
  $region1: #{tpu_custom_call.1} parent=0
    #allocation5 [shape = 'u8[262144]{0}', space=vmem, size = 0x40000, scoped, tag = 'output window, operand 0']
    #allocation6 [shape = 's32[2]{0}', space=sflag, size = 0x8, scoped, tag = 'scoped memory for tpu_custom_call.1']
    %10 = vsyncpa [#allocation6], 0
    %s11 = scalar_lea.sflag [#allocation6], 1
    %12 = vsyncpa %s11, 0
    loop: start=0, step=1, limit=6
    $region2: #{tpu_custom_call.1} parent=1 // loop_pre_header
      _
    $region3: #{tpu_custom_call.1} parent=1 // loop_header
      %s14 = sphi 0, %s18
      %p15 = scmp.ge.s32.totalorder %s14, 6
      %s21 = sphi 0, %s33
      %s22 = sphi 0, %s29
      %s23 = sphi 0, %s21
      %s24 = sphi 0, %s22
      %s25 = sphi 0, %s23
      %s26 = sphi 0, %s24
      %s34 = sphi 0, %s34
      %s36 = sphi 0, %s34
      %s37 = sphi 0, %s36
      %s51 = sphi 0, %s37
      %s55 = sphi 0, %s55
      %s57 = sphi 0, %s55
      %s58 = sphi 0, %s57
      %s72 = sphi 0, %s58
      %s76 = sphi 0, %s76
      %s78 = sphi 0, %s76
      %s79 = sphi 0, %s78
      %s93 = sphi 0, %s79
      %s97 = sphi 0, %s97
      %s99 = sphi 0, %s97
      %s100 = sphi 0, %s99
      %s114 = sphi 0, %s100
      %s122 = sphi 0, %s124
      %s125 = sphi 0, %s122
      %s126 = sphi 0, %s125
      %s142 = sphi 0, %s126
    $region4: #{tpu_custom_call.1} parent=1 // loop_header_branch
      %17 = sbr.rel (%p15) target = $region8
    $region5: #{tpu_custom_call.1} parent=1 // loop_body
      %s19 = ssub.s32 %s14, 1
      %s20 = ssub.s32 %s14, 2
      %s27 = sadd.s32 1, %s22
      %p28 = scmp.ge.s32.totalorder %s27, 2
      %s29 = scalar_select %p28, 0, %s27
      %s30 = sadd.s32 1, %s21
      %s31 = scalar_select %p28, %s30, %s21
      %p32 = scmp.ge.s32.totalorder %s31, 2
      %s33 = scalar_select %p32, 0, %s31
      %s35 = sadd.s32 %s34, 1
      %p38 = scmp.eq.s32.totalorder %s14, 3
      %p39 = scmp.ne.s32.totalorder %s34, %s36
      %p40 = scmp.eq.s32.totalorder %s14, 0
      %p41 = por %p39, %p40
      %p42 = scmp.ne.s32.totalorder %s34, %s36
      %p43 = scmp.eq.s32.totalorder %s19, 3
      %p44 = por %p42, %p43
      %p45 = scmp.ne.s32.totalorder %s36, %s37
      %p46 = scmp.eq.s32.totalorder %s19, 0
      %p47 = por %p45, %p46
      %p48 = scmp.ne.s32.totalorder %s36, %s37
      %p49 = scmp.eq.s32.totalorder %s20, 3
      %p50 = por %p48, %p49
      %p52 = scmp.ne.s32.totalorder %s37, %s51
      %p53 = scmp.eq.s32.totalorder %s20, 0
      %p54 = por %p52, %p53
      %s56 = sadd.s32 %s55, 1
      %p59 = scmp.eq.s32.totalorder %s14, 3
      %p60 = scmp.ne.s32.totalorder %s55, %s57
      %p61 = scmp.eq.s32.totalorder %s14, 0
      %p62 = por %p60, %p61
      %p63 = scmp.ne.s32.totalorder %s55, %s57
      %p64 = scmp.eq.s32.totalorder %s19, 3
      %p65 = por %p63, %p64
      %p66 = scmp.ne.s32.totalorder %s57, %s58
      %p67 = scmp.eq.s32.totalorder %s19, 0
      %p68 = por %p66, %p67
      %p69 = scmp.ne.s32.totalorder %s57, %s58
      %p70 = scmp.eq.s32.totalorder %s20, 3
      %p71 = por %p69, %p70
      %p73 = scmp.ne.s32.totalorder %s58, %s72
      %p74 = scmp.eq.s32.totalorder %s20, 0
      %p75 = por %p73, %p74
      %s77 = sadd.s32 %s76, 1
      %p80 = scmp.eq.s32.totalorder %s14, 3
      %p81 = scmp.ne.s32.totalorder %s76, %s78
      %p82 = scmp.eq.s32.totalorder %s14, 0
      %p83 = por %p81, %p82
      %p84 = scmp.ne.s32.totalorder %s76, %s78
      %p85 = scmp.eq.s32.totalorder %s19, 3
      %p86 = por %p84, %p85
      %p87 = scmp.ne.s32.totalorder %s78, %s79
      %p88 = scmp.eq.s32.totalorder %s19, 0
      %p89 = por %p87, %p88
      %p90 = scmp.ne.s32.totalorder %s78, %s79
      %p91 = scmp.eq.s32.totalorder %s20, 3
      %p92 = por %p90, %p91
      %p94 = scmp.ne.s32.totalorder %s79, %s93
      %p95 = scmp.eq.s32.totalorder %s20, 0
      %p96 = por %p94, %p95
      %s98 = sadd.s32 %s97, 1
      %p101 = scmp.eq.s32.totalorder %s14, 3
      %p102 = scmp.ne.s32.totalorder %s97, %s99
      %p103 = scmp.eq.s32.totalorder %s14, 0
      %p104 = por %p102, %p103
      %p105 = scmp.ne.s32.totalorder %s97, %s99
      %p106 = scmp.eq.s32.totalorder %s19, 3
      %p107 = por %p105, %p106
      %p108 = scmp.ne.s32.totalorder %s99, %s100
      %p109 = scmp.eq.s32.totalorder %s19, 0
      %p110 = por %p108, %p109
      %p111 = scmp.ne.s32.totalorder %s99, %s100
      %p112 = scmp.eq.s32.totalorder %s20, 3
      %p113 = por %p111, %p112
      %p115 = scmp.ne.s32.totalorder %s100, %s114
      %p116 = scmp.eq.s32.totalorder %s20, 0
      %p117 = por %p115, %p116
      %s118 = smul.u32 %s22, %s21
      %s119 = smul.u32 %s29, %s33
      %s120 = ssub.s32 %s118, %s119
      %p121 = scmp.eq.s32.totalorder %s120, 0
      %s123 = sadd.s32 %s122, 1
      %s124 = scalar_select %p121, %s122, %s123
      %p127 = pneg %p121
      %p128 = scmp.eq.s32.totalorder %s14, 3
      %p129 = por %p127, %p128
      %p130 = scmp.ne.s32.totalorder %s122, %s125
      %p131 = scmp.eq.s32.totalorder %s14, 0
      %p132 = por %p130, %p131
      %p133 = scmp.ne.s32.totalorder %s122, %s125
      %p134 = scmp.eq.s32.totalorder %s19, 3
      %p135 = por %p133, %p134
      %p136 = scmp.ne.s32.totalorder %s125, %s126
      %p137 = scmp.eq.s32.totalorder %s19, 0
      %p138 = por %p136, %p137
      %p139 = scmp.ne.s32.totalorder %s125, %s126
      %p140 = scmp.eq.s32.totalorder %s20, 3
      %p141 = por %p139, %p140
      %p143 = scmp.ne.s32.totalorder %s126, %s142
      %p144 = scmp.eq.s32.totalorder %s20, 0
      %p145 = por %p143, %p144
      %p146 = scmp.le.s32.totalorder 1, %s14
      %p147 = scmp.lt.s32.totalorder %s14, 5
      %p148 = pnand %p146, %p147
      %p149 = pneg %p148
      // Predicated region
      $region9: #{tpu_custom_call.1} parent=5 // pred_check
        _
      $region10: #{tpu_custom_call.1} parent=5 // pred_check_branch
        %151 = sbr.rel (%p148) target = $region12
      $region11: #{tpu_custom_call.1} parent=5 // pred_region
        %s152 = ssub.s32 %s14, 1
        // Predicated region
        $region13: #{tpu_custom_call.1} parent=11 // pred_check
          %p153 = pneg %p47
        $region14: #{tpu_custom_call.1} parent=11 // pred_check_branch
          %155 = sbr.rel (%p153) target = $region16
        $region15: #{tpu_custom_call.1} parent=11 // pred_region
          _
        $region16: #{tpu_custom_call.1} parent=11 // pred_fallthru
          _
        // Predicated region
        $region17: #{tpu_custom_call.1} parent=11 // pred_check
          %p156 = pneg %p68
        $region18: #{tpu_custom_call.1} parent=11 // pred_check_branch
          %158 = sbr.rel (%p156) target = $region20
        $region19: #{tpu_custom_call.1} parent=11 // pred_region
          _
        $region20: #{tpu_custom_call.1} parent=11 // pred_fallthru
          _
        // Predicated region
        $region21: #{tpu_custom_call.1} parent=11 // pred_check
          %p159 = pneg %p89
        $region22: #{tpu_custom_call.1} parent=11 // pred_check_branch
          %161 = sbr.rel (%p159) target = $region24
        $region23: #{tpu_custom_call.1} parent=11 // pred_region
          _
        $region24: #{tpu_custom_call.1} parent=11 // pred_fallthru
          _
        // Predicated region
        $region25: #{tpu_custom_call.1} parent=11 // pred_check
          %p162 = pneg %p110
        $region26: #{tpu_custom_call.1} parent=11 // pred_check_branch
          %164 = sbr.rel (%p162) target = $region28
        $region27: #{tpu_custom_call.1} parent=11 // pred_region
          _
        $region28: #{tpu_custom_call.1} parent=11 // pred_fallthru
          _
      $region12: #{tpu_custom_call.1} parent=5 // pred_fallthru
        _
      %p165 = scmp.lt.s32.totalorder %s14, 4
      // Predicated region
      $region29: #{tpu_custom_call.1} parent=5 // pred_check
        %p166 = pneg %p165
      $region30: #{tpu_custom_call.1} parent=5 // pred_check_branch
        %168 = sbr.rel (%p166) target = $region32
      $region31: #{tpu_custom_call.1} parent=5 // pred_region
        _
      $region32: #{tpu_custom_call.1} parent=5 // pred_fallthru
        _
      %p169 = scmp.le.s32.totalorder 1, %s14
      %p170 = scmp.lt.s32.totalorder %s14, 5
      %p171 = pnand %p169, %p170
      %p172 = pneg %p171
      // Predicated region
      $region33: #{tpu_custom_call.1} parent=5 // pred_check
        _
      $region34: #{tpu_custom_call.1} parent=5 // pred_check_branch
        %174 = sbr.rel (%p171) target = $region36
      $region35: #{tpu_custom_call.1} parent=5 // pred_region
        %s175 = ssub.s32 %s14, 1
        %p176 = pneg %p47
        %p177 = pneg %p44
        %p178 = pneg %p68
        %p179 = pneg %p65
        %p180 = pneg %p89
        %p181 = pneg %p86
        %p182 = pneg %p110
        %p183 = pneg %p107
        %p184 = pneg %p138
        %p185 = pneg %p135
        %s186 = sand.u32 %s125, 1
        %s187 = scalar_lea.sflag [#allocation6], %s186
        %s188 = sand.u32 %s125, 1
        %s189 = smul.addr %s188, 256
        %s190 = scalar_lea.vmem [#allocation5], %s189
        %s191 = smul.u32 %s24, %s23
        %s192 = smul.u32 32, %s191
        %p194 = scmp.eq.s32.totalorder %s23, 0
        %p195 = scmp.eq.s32.totalorder %s24, 0
        %p196 = pnand %p194, %p195
        %p197 = pneg %p196
        // Predicated region
        $region37: #{tpu_custom_call.1} parent=35 // pred_check
          _
        $region38: #{tpu_custom_call.1} parent=35 // pred_check_branch
          %199 = sbr.rel (%p196) target = $region40
        $region39: #{tpu_custom_call.1} parent=35 // pred_region
          // Predicated region
          $region41: #{tpu_custom_call.1} parent=39 // pred_check
            _
          $region42: #{tpu_custom_call.1} parent=39 // pred_check_branch
            %201 = sbr.rel target = $region44
          $region43: #{tpu_custom_call.1} parent=39 // pred_region
            %202 = sst [smem:[#allocation9]] [#allocation8]
            %203 = sst [smem:[#allocation10]] [#allocation7]
          $region44: #{tpu_custom_call.1} parent=39 // pred_fallthru
            _
          %205 = shalt.err (0)
          %s207 = sshll.u32 %s0, 4
          %s208 = int_to_ptr.hbm [resolvable:$true] %s207
          %s209 = sshll.u32 [#allocation2], 4
          %s210 = int_to_ptr.vmem [resolvable:$true] %s209
          %212 = dma.hbm_to_vmem [thread:$0]  %s208, 16384, %s210, [#allocation4]
          %s213 = smul.u32 4, 64
          %s214 = smul.u32 %s213, 4
          %s215 = sshll.u32 %s214, 4
          %216 = dma.done [#allocation4], %s215
        $region40: #{tpu_custom_call.1} parent=35 // pred_fallthru
          _
        %s217 = smul.u32 %s24, 256
        // Predicated region
        $region45: #{tpu_custom_call.1} parent=35 // pred_check
          %p218 = pneg %p194
        $region46: #{tpu_custom_call.1} parent=35 // pred_check_branch
          %220 = sbr.rel (%p218) target = $region48
        $region47: #{tpu_custom_call.1} parent=35 // pred_region
          %s221 = sshra.s32 %s217, 3
          %s222 = sand.u32 %s217, 7
          %s223 = smul.u32 %s221, 4
          %s224 = smul.addr %s223, 4
          %s225 = scalar_lea.vmem [#allocation2], %s224
          %v226 = vld [vmem:[%s225] sm:$0xff]
          %v227 = vld [vmem:[%s225 + $0x8] sm:$0xff]
          %v228 = vld [vmem:[%s225 + $0x10] sm:$0xff]
          %v229 = vld [vmem:[%s225 + $0x18] sm:$0xff]
          %v230 = vld [vmem:[%s225 + $0x20] sm:$0xff]
          %v231 = vld [vmem:[%s225 + $0x28] sm:$0xff]
          %v232 = vld [vmem:[%s225 + $0x30] sm:$0xff]
          %v233 = vld [vmem:[%s225 + $0x38] sm:$0xff]
          %v234 = vld [vmem:[%s225 + $0x40] sm:$0xff]
          %v235 = vld [vmem:[%s225 + $0x48] sm:$0xff]
          %v236 = vld [vmem:[%s225 + $0x50] sm:$0xff]
          %v237 = vld [vmem:[%s225 + $0x58] sm:$0xff]
          %v238 = vld [vmem:[%s225 + $0x60] sm:$0xff]
          %v239 = vld [vmem:[%s225 + $0x68] sm:$0xff]
          %v240 = vld [vmem:[%s225 + $0x70] sm:$0xff]
          %v241 = vld [vmem:[%s225 + $0x78] sm:$0xff]
          %v242 = vld [vmem:[%s225 + $0x80] sm:$0xff]
          %v243 = vld [vmem:[%s225 + $0x88] sm:$0xff]
          %v244 = vld [vmem:[%s225 + $0x90] sm:$0xff]
          %v245 = vld [vmem:[%s225 + $0x98] sm:$0xff]
          %v246 = vld [vmem:[%s225 + $0xa0] sm:$0xff]
          %v247 = vld [vmem:[%s225 + $0xa8] sm:$0xff]
          %v248 = vld [vmem:[%s225 + $0xb0] sm:$0xff]
          %v249 = vld [vmem:[%s225 + $0xb8] sm:$0xff]
          %v250 = vld [vmem:[%s225 + $0xc0] sm:$0xff]
          %v251 = vld [vmem:[%s225 + $0xc8] sm:$0xff]
          %v252 = vld [vmem:[%s225 + $0xd0] sm:$0xff]
          %v253 = vld [vmem:[%s225 + $0xd8] sm:$0xff]
          %v254 = vld [vmem:[%s225 + $0xe0] sm:$0xff]
          %v255 = vld [vmem:[%s225 + $0xe8] sm:$0xff]
          %v256 = vld [vmem:[%s225 + $0xf0] sm:$0xff]
          %v257 = vld [vmem:[%s225 + $0xf8] sm:$0xff]
          %v258 = vld [vmem:[%s225 + $0x100] sm:$0xff]
          %v259 = vld [vmem:[%s225 + $0x108] sm:$0xff]
          %v260 = vld [vmem:[%s225 + $0x110] sm:$0xff]
          %v261 = vld [vmem:[%s225 + $0x118] sm:$0xff]
          %v262 = vld [vmem:[%s225 + $0x120] sm:$0xff]
          %v263 = vld [vmem:[%s225 + $0x128] sm:$0xff]
          %v264 = vld [vmem:[%s225 + $0x130] sm:$0xff]
          %v265 = vld [vmem:[%s225 + $0x138] sm:$0xff]
          %v266 = vld [vmem:[%s225 + $0x140] sm:$0xff]
          %v267 = vld [vmem:[%s225 + $0x148] sm:$0xff]
          %v268 = vld [vmem:[%s225 + $0x150] sm:$0xff]
          %v269 = vld [vmem:[%s225 + $0x158] sm:$0xff]
          %v270 = vld [vmem:[%s225 + $0x160] sm:$0xff]
          %v271 = vld [vmem:[%s225 + $0x168] sm:$0xff]
          %v272 = vld [vmem:[%s225 + $0x170] sm:$0xff]
          %v273 = vld [vmem:[%s225 + $0x178] sm:$0xff]
          %v274 = vld [vmem:[%s225 + $0x180] sm:$0xff]
          %v275 = vld [vmem:[%s225 + $0x188] sm:$0xff]
          %v276 = vld [vmem:[%s225 + $0x190] sm:$0xff]
          %v277 = vld [vmem:[%s225 + $0x198] sm:$0xff]
          %v278 = vld [vmem:[%s225 + $0x1a0] sm:$0xff]
          %v279 = vld [vmem:[%s225 + $0x1a8] sm:$0xff]
          %v280 = vld [vmem:[%s225 + $0x1b0] sm:$0xff]
          %v281 = vld [vmem:[%s225 + $0x1b8] sm:$0xff]
          %v282 = vld [vmem:[%s225 + $0x1c0] sm:$0xff]
          %v283 = vld [vmem:[%s225 + $0x1c8] sm:$0xff]
          %v284 = vld [vmem:[%s225 + $0x1d0] sm:$0xff]
          %v285 = vld [vmem:[%s225 + $0x1d8] sm:$0xff]
          %v286 = vld [vmem:[%s225 + $0x1e0] sm:$0xff]
          %v287 = vld [vmem:[%s225 + $0x1e8] sm:$0xff]
          %v288 = vld [vmem:[%s225 + $0x1f0] sm:$0xff]
          %v289 = vld [vmem:[%s225 + $0x1f8] sm:$0xff]
          %v290 = vld [vmem:[%s1] sm:$0xf]
          %v291 = vld [vmem:[%s1 + $0x4] sm:$0xf]
          %v292 = vld [vmem:[%s1 + $0x8] sm:$0xf]
          %v293 = vld [vmem:[%s1 + $0xc] sm:$0xf]
          %v294 = vld [vmem:[%s1 + $0x10] sm:$0xf]
          %v295 = vld [vmem:[%s1 + $0x14] sm:$0xf]
          %v296 = vld [vmem:[%s1 + $0x18] sm:$0xf]
          %v297 = vld [vmem:[%s1 + $0x1c] sm:$0xf]
          %v298 = vld [vmem:[%s1 + $0x20] sm:$0xf]
          %v299 = vld [vmem:[%s1 + $0x24] sm:$0xf]
          %v300 = vld [vmem:[%s1 + $0x28] sm:$0xf]
          %v301 = vld [vmem:[%s1 + $0x2c] sm:$0xf]
          %v302 = vld [vmem:[%s1 + $0x30] sm:$0xf]
          %v303 = vld [vmem:[%s1 + $0x34] sm:$0xf]
          %v304 = vld [vmem:[%s1 + $0x38] sm:$0xf]
          %v305 = vld [vmem:[%s1 + $0x3c] sm:$0xf]
          %v306 = vld [vmem:[%s1 + $0x40] sm:$0xf]
          %v307 = vld [vmem:[%s1 + $0x44] sm:$0xf]
          %v308 = vld [vmem:[%s1 + $0x48] sm:$0xf]
          %v309 = vld [vmem:[%s1 + $0x4c] sm:$0xf]
          %v310 = vld [vmem:[%s1 + $0x50] sm:$0xf]
          %v311 = vld [vmem:[%s1 + $0x54] sm:$0xf]
          %v312 = vld [vmem:[%s1 + $0x58] sm:$0xf]
          %v313 = vld [vmem:[%s1 + $0x5c] sm:$0xf]
          %v314 = vld [vmem:[%s1 + $0x60] sm:$0xf]
          %v315 = vld [vmem:[%s1 + $0x64] sm:$0xf]
          %v316 = vld [vmem:[%s1 + $0x68] sm:$0xf]
          %v317 = vld [vmem:[%s1 + $0x6c] sm:$0xf]
          %v318 = vld [vmem:[%s1 + $0x70] sm:$0xf]
          %v319 = vld [vmem:[%s1 + $0x74] sm:$0xf]
          %v320 = vld [vmem:[%s1 + $0x78] sm:$0xf]
          %v321 = vld [vmem:[%s1 + $0x7c] sm:$0xf]
          %v322 = vld [vmem:[%s1 + $0x80] sm:$0xf]
          %v323 = vld [vmem:[%s1 + $0x84] sm:$0xf]
          %v324 = vld [vmem:[%s1 + $0x88] sm:$0xf]
          %v325 = vld [vmem:[%s1 + $0x8c] sm:$0xf]
          %v326 = vld [vmem:[%s1 + $0x90] sm:$0xf]
          %v327 = vld [vmem:[%s1 + $0x94] sm:$0xf]
          %v328 = vld [vmem:[%s1 + $0x98] sm:$0xf]
          %v329 = vld [vmem:[%s1 + $0x9c] sm:$0xf]
          %v330 = vld [vmem:[%s1 + $0xa0] sm:$0xf]
          %v331 = vld [vmem:[%s1 + $0xa4] sm:$0xf]
          %v332 = vld [vmem:[%s1 + $0xa8] sm:$0xf]
          %v333 = vld [vmem:[%s1 + $0xac] sm:$0xf]
          %v334 = vld [vmem:[%s1 + $0xb0] sm:$0xf]
          %v335 = vld [vmem:[%s1 + $0xb4] sm:$0xf]
          %v336 = vld [vmem:[%s1 + $0xb8] sm:$0xf]
          %v337 = vld [vmem:[%s1 + $0xbc] sm:$0xf]
          %v338 = vld [vmem:[%s1 + $0xc0] sm:$0xf]
          %v339 = vld [vmem:[%s1 + $0xc4] sm:$0xf]
          %v340 = vld [vmem:[%s1 + $0xc8] sm:$0xf]
          %v341 = vld [vmem:[%s1 + $0xcc] sm:$0xf]
          %v342 = vld [vmem:[%s1 + $0xd0] sm:$0xf]
          %v343 = vld [vmem:[%s1 + $0xd4] sm:$0xf]
          %v344 = vld [vmem:[%s1 + $0xd8] sm:$0xf]
          %v345 = vld [vmem:[%s1 + $0xdc] sm:$0xf]
          %v346 = vld [vmem:[%s1 + $0xe0] sm:$0xf]
          %v347 = vld [vmem:[%s1 + $0xe4] sm:$0xf]
          %v348 = vld [vmem:[%s1 + $0xe8] sm:$0xf]
          %v349 = vld [vmem:[%s1 + $0xec] sm:$0xf]
          %v350 = vld [vmem:[%s1 + $0xf0] sm:$0xf]
          %v351 = vld [vmem:[%s1 + $0xf4] sm:$0xf]
          %v352 = vld [vmem:[%s1 + $0xf8] sm:$0xf]
          %v353 = vld [vmem:[%s1 + $0xfc] sm:$0xf]
          %v354 = vld [vmem:[%s2] sm:$0x1]
          %v356 = vperm.slane %v354, 0
          %v422 = vunpack.c.l.b16 %v226
          %v423 = vunpack.c.h.b16 %v226
          %v424 = vunpack.c.l.b16 %v227
          %v425 = vunpack.c.h.b16 %v227
          %v426 = vunpack.c.l.b16 %v228
          %v427 = vunpack.c.h.b16 %v228
          %v428 = vunpack.c.l.b16 %v229
          %v429 = vunpack.c.h.b16 %v229
          %v430 = vunpack.c.l.b16 %v230
          %v431 = vunpack.c.h.b16 %v230
          %v432 = vunpack.c.l.b16 %v231
          %v433 = vunpack.c.h.b16 %v231
          %v434 = vunpack.c.l.b16 %v232
          %v435 = vunpack.c.h.b16 %v232
          %v436 = vunpack.c.l.b16 %v233
          %v437 = vunpack.c.h.b16 %v233
          %v438 = vunpack.c.l.b16 %v234
          %v439 = vunpack.c.h.b16 %v234
          %v440 = vunpack.c.l.b16 %v235
          %v441 = vunpack.c.h.b16 %v235
          %v442 = vunpack.c.l.b16 %v236
          %v443 = vunpack.c.h.b16 %v236
          %v444 = vunpack.c.l.b16 %v237
          %v445 = vunpack.c.h.b16 %v237
          %v446 = vunpack.c.l.b16 %v238
          %v447 = vunpack.c.h.b16 %v238
          %v448 = vunpack.c.l.b16 %v239
          %v449 = vunpack.c.h.b16 %v239
          %v450 = vunpack.c.l.b16 %v240
          %v451 = vunpack.c.h.b16 %v240
          %v452 = vunpack.c.l.b16 %v241
          %v453 = vunpack.c.h.b16 %v241
          %v454 = vunpack.c.l.b16 %v242
          %v455 = vunpack.c.h.b16 %v242
          %v456 = vunpack.c.l.b16 %v243
          %v457 = vunpack.c.h.b16 %v243
          %v458 = vunpack.c.l.b16 %v244
          %v459 = vunpack.c.h.b16 %v244
          %v460 = vunpack.c.l.b16 %v245
          %v461 = vunpack.c.h.b16 %v245
          %v462 = vunpack.c.l.b16 %v246
          %v463 = vunpack.c.h.b16 %v246
          %v464 = vunpack.c.l.b16 %v247
          %v465 = vunpack.c.h.b16 %v247
          %v466 = vunpack.c.l.b16 %v248
          %v467 = vunpack.c.h.b16 %v248
          %v468 = vunpack.c.l.b16 %v249
          %v469 = vunpack.c.h.b16 %v249
          %v470 = vunpack.c.l.b16 %v250
          %v471 = vunpack.c.h.b16 %v250
          %v472 = vunpack.c.l.b16 %v251
          %v473 = vunpack.c.h.b16 %v251
          %v474 = vunpack.c.l.b16 %v252
          %v475 = vunpack.c.h.b16 %v252
          %v476 = vunpack.c.l.b16 %v253
          %v477 = vunpack.c.h.b16 %v253
          %v478 = vunpack.c.l.b16 %v254
          %v479 = vunpack.c.h.b16 %v254
          %v480 = vunpack.c.l.b16 %v255
          %v481 = vunpack.c.h.b16 %v255
          %v482 = vunpack.c.l.b16 %v256
          %v483 = vunpack.c.h.b16 %v256
          %v484 = vunpack.c.l.b16 %v257
          %v485 = vunpack.c.h.b16 %v257
          %v486 = vunpack.c.l.b16 %v258
          %v487 = vunpack.c.h.b16 %v258
          %v488 = vunpack.c.l.b16 %v259
          %v489 = vunpack.c.h.b16 %v259
          %v490 = vunpack.c.l.b16 %v260
          %v491 = vunpack.c.h.b16 %v260
          %v492 = vunpack.c.l.b16 %v261
          %v493 = vunpack.c.h.b16 %v261
          %v494 = vunpack.c.l.b16 %v262
          %v495 = vunpack.c.h.b16 %v262
          %v496 = vunpack.c.l.b16 %v263
          %v497 = vunpack.c.h.b16 %v263
          %v498 = vunpack.c.l.b16 %v264
          %v499 = vunpack.c.h.b16 %v264
          %v500 = vunpack.c.l.b16 %v265
          %v501 = vunpack.c.h.b16 %v265
          %v502 = vunpack.c.l.b16 %v266
          %v503 = vunpack.c.h.b16 %v266
          %v504 = vunpack.c.l.b16 %v267
          %v505 = vunpack.c.h.b16 %v267
          %v506 = vunpack.c.l.b16 %v268
          %v507 = vunpack.c.h.b16 %v268
          %v508 = vunpack.c.l.b16 %v269
          %v509 = vunpack.c.h.b16 %v269
          %v510 = vunpack.c.l.b16 %v270
          %v511 = vunpack.c.h.b16 %v270
          %v512 = vunpack.c.l.b16 %v271
          %v513 = vunpack.c.h.b16 %v271
          %v514 = vunpack.c.l.b16 %v272
          %v515 = vunpack.c.h.b16 %v272
          %v516 = vunpack.c.l.b16 %v273
          %v517 = vunpack.c.h.b16 %v273
          %v518 = vunpack.c.l.b16 %v274
          %v519 = vunpack.c.h.b16 %v274
          %v520 = vunpack.c.l.b16 %v275
          %v521 = vunpack.c.h.b16 %v275
          %v522 = vunpack.c.l.b16 %v276
          %v523 = vunpack.c.h.b16 %v276
          %v524 = vunpack.c.l.b16 %v277
          %v525 = vunpack.c.h.b16 %v277
          %v526 = vunpack.c.l.b16 %v278
          %v527 = vunpack.c.h.b16 %v278
          %v528 = vunpack.c.l.b16 %v279
          %v529 = vunpack.c.h.b16 %v279
          %v530 = vunpack.c.l.b16 %v280
          %v531 = vunpack.c.h.b16 %v280
          %v532 = vunpack.c.l.b16 %v281
          %v533 = vunpack.c.h.b16 %v281
          %v534 = vunpack.c.l.b16 %v282
          %v535 = vunpack.c.h.b16 %v282
          %v536 = vunpack.c.l.b16 %v283
          %v537 = vunpack.c.h.b16 %v283
          %v538 = vunpack.c.l.b16 %v284
          %v539 = vunpack.c.h.b16 %v284
          %v540 = vunpack.c.l.b16 %v285
          %v541 = vunpack.c.h.b16 %v285
          %v542 = vunpack.c.l.b16 %v286
          %v543 = vunpack.c.h.b16 %v286
          %v544 = vunpack.c.l.b16 %v287
          %v545 = vunpack.c.h.b16 %v287
          %v546 = vunpack.c.l.b16 %v288
          %v547 = vunpack.c.h.b16 %v288
          %v548 = vunpack.c.l.b16 %v289
          %v549 = vunpack.c.h.b16 %v289
          %v550 = vpack.c.b16 %v426, %v422
          %v551 = vpack.c.b16 %v427, %v423
          %v552 = vpack.c.b16 %v428, %v424
          %v553 = vpack.c.b16 %v429, %v425
          %v554 = vpack.c.b16 %v434, %v430
          %v555 = vpack.c.b16 %v435, %v431
          %v556 = vpack.c.b16 %v436, %v432
          %v557 = vpack.c.b16 %v437, %v433
          %v558 = vpack.c.b16 %v442, %v438
          %v559 = vpack.c.b16 %v443, %v439
          %v560 = vpack.c.b16 %v444, %v440
          %v561 = vpack.c.b16 %v445, %v441
          %v562 = vpack.c.b16 %v450, %v446
          %v563 = vpack.c.b16 %v451, %v447
          %v564 = vpack.c.b16 %v452, %v448
          %v565 = vpack.c.b16 %v453, %v449
          %v566 = vpack.c.b16 %v458, %v454
          %v567 = vpack.c.b16 %v459, %v455
          %v568 = vpack.c.b16 %v460, %v456
          %v569 = vpack.c.b16 %v461, %v457
          %v570 = vpack.c.b16 %v466, %v462
          %v571 = vpack.c.b16 %v467, %v463
          %v572 = vpack.c.b16 %v468, %v464
          %v573 = vpack.c.b16 %v469, %v465
          %v574 = vpack.c.b16 %v474, %v470
          %v575 = vpack.c.b16 %v475, %v471
          %v576 = vpack.c.b16 %v476, %v472
          %v577 = vpack.c.b16 %v477, %v473
          %v578 = vpack.c.b16 %v482, %v478
          %v579 = vpack.c.b16 %v483, %v479
          %v580 = vpack.c.b16 %v484, %v480
          %v581 = vpack.c.b16 %v485, %v481
          %v582 = vpack.c.b16 %v490, %v486
          %v583 = vpack.c.b16 %v491, %v487
          %v584 = vpack.c.b16 %v492, %v488
          %v585 = vpack.c.b16 %v493, %v489
          %v586 = vpack.c.b16 %v498, %v494
          %v587 = vpack.c.b16 %v499, %v495
          %v588 = vpack.c.b16 %v500, %v496
          %v589 = vpack.c.b16 %v501, %v497
          %v590 = vpack.c.b16 %v506, %v502
          %v591 = vpack.c.b16 %v507, %v503
          %v592 = vpack.c.b16 %v508, %v504
          %v593 = vpack.c.b16 %v509, %v505
          %v594 = vpack.c.b16 %v514, %v510
          %v595 = vpack.c.b16 %v515, %v511
          %v596 = vpack.c.b16 %v516, %v512
          %v597 = vpack.c.b16 %v517, %v513
          %v598 = vpack.c.b16 %v522, %v518
          %v599 = vpack.c.b16 %v523, %v519
          %v600 = vpack.c.b16 %v524, %v520
          %v601 = vpack.c.b16 %v525, %v521
          %v602 = vpack.c.b16 %v530, %v526
          %v603 = vpack.c.b16 %v531, %v527
          %v604 = vpack.c.b16 %v532, %v528
          %v605 = vpack.c.b16 %v533, %v529
          %v606 = vpack.c.b16 %v538, %v534
          %v607 = vpack.c.b16 %v539, %v535
          %v608 = vpack.c.b16 %v540, %v536
          %v609 = vpack.c.b16 %v541, %v537
          %v610 = vpack.c.b16 %v546, %v542
          %v611 = vpack.c.b16 %v547, %v543
          %v612 = vpack.c.b16 %v548, %v544
          %v613 = vpack.c.b16 %v549, %v545
          %v742 = vunpack.c.l.b16 %v290
          %v743 = vunpack.c.l.b16 %v291
          %v744 = vunpack.c.l.b16 %v292
          %v745 = vunpack.c.l.b16 %v293
          %v746 = vunpack.c.l.b16 %v294
          %v747 = vunpack.c.l.b16 %v295
          %v748 = vunpack.c.l.b16 %v296
          %v749 = vunpack.c.l.b16 %v297
          %v750 = vunpack.c.l.b16 %v298
          %v751 = vunpack.c.l.b16 %v299
          %v752 = vunpack.c.l.b16 %v300
          %v753 = vunpack.c.l.b16 %v301
          %v754 = vunpack.c.l.b16 %v302
          %v755 = vunpack.c.l.b16 %v303
          %v756 = vunpack.c.l.b16 %v304
          %v757 = vunpack.c.l.b16 %v305
          %v758 = vunpack.c.l.b16 %v306
          %v759 = vunpack.c.l.b16 %v307
          %v760 = vunpack.c.l.b16 %v308
          %v761 = vunpack.c.l.b16 %v309
          %v762 = vunpack.c.l.b16 %v310
          %v763 = vunpack.c.l.b16 %v311
          %v764 = vunpack.c.l.b16 %v312
          %v765 = vunpack.c.l.b16 %v313
          %v766 = vunpack.c.l.b16 %v314
          %v767 = vunpack.c.l.b16 %v315
          %v768 = vunpack.c.l.b16 %v316
          %v769 = vunpack.c.l.b16 %v317
          %v770 = vunpack.c.l.b16 %v318
          %v771 = vunpack.c.l.b16 %v319
          %v772 = vunpack.c.l.b16 %v320
          %v773 = vunpack.c.l.b16 %v321
          %v774 = vunpack.c.l.b16 %v322
          %v775 = vunpack.c.l.b16 %v323
          %v776 = vunpack.c.l.b16 %v324
          %v777 = vunpack.c.l.b16 %v325
          %v778 = vunpack.c.l.b16 %v326
          %v779 = vunpack.c.l.b16 %v327
          %v780 = vunpack.c.l.b16 %v328
          %v781 = vunpack.c.l.b16 %v329
          %v782 = vunpack.c.l.b16 %v330
          %v783 = vunpack.c.l.b16 %v331
          %v784 = vunpack.c.l.b16 %v332
          %v785 = vunpack.c.l.b16 %v333
          %v786 = vunpack.c.l.b16 %v334
          %v787 = vunpack.c.l.b16 %v335
          %v788 = vunpack.c.l.b16 %v336
          %v789 = vunpack.c.l.b16 %v337
          %v790 = vunpack.c.l.b16 %v338
          %v791 = vunpack.c.l.b16 %v339
          %v792 = vunpack.c.l.b16 %v340
          %v793 = vunpack.c.l.b16 %v341
          %v794 = vunpack.c.l.b16 %v342
          %v795 = vunpack.c.l.b16 %v343
          %v796 = vunpack.c.l.b16 %v344
          %v797 = vunpack.c.l.b16 %v345
          %v798 = vunpack.c.l.b16 %v346
          %v799 = vunpack.c.l.b16 %v347
          %v800 = vunpack.c.l.b16 %v348
          %v801 = vunpack.c.l.b16 %v349
          %v802 = vunpack.c.l.b16 %v350
          %v803 = vunpack.c.l.b16 %v351
          %v804 = vunpack.c.l.b16 %v352
          %v805 = vunpack.c.l.b16 %v353
          %v806 = vpack.c.b16 %v743, %v742
          %v807 = vpack.c.b16 %v745, %v744
          %v808 = vpack.c.b16 %v747, %v746
          %v809 = vpack.c.b16 %v749, %v748
          %v810 = vpack.c.b16 %v751, %v750
          %v811 = vpack.c.b16 %v753, %v752
          %v812 = vpack.c.b16 %v755, %v754
          %v813 = vpack.c.b16 %v757, %v756
          %v814 = vpack.c.b16 %v759, %v758
          %v815 = vpack.c.b16 %v761, %v760
          %v816 = vpack.c.b16 %v763, %v762
          %v817 = vpack.c.b16 %v765, %v764
          %v818 = vpack.c.b16 %v767, %v766
          %v819 = vpack.c.b16 %v769, %v768
          %v820 = vpack.c.b16 %v771, %v770
          %v821 = vpack.c.b16 %v773, %v772
          %v822 = vpack.c.b16 %v775, %v774
          %v823 = vpack.c.b16 %v777, %v776
          %v824 = vpack.c.b16 %v779, %v778
          %v825 = vpack.c.b16 %v781, %v780
          %v826 = vpack.c.b16 %v783, %v782
          %v827 = vpack.c.b16 %v785, %v784
          %v828 = vpack.c.b16 %v787, %v786
          %v829 = vpack.c.b16 %v789, %v788
          %v830 = vpack.c.b16 %v791, %v790
          %v831 = vpack.c.b16 %v793, %v792
          %v832 = vpack.c.b16 %v795, %v794
          %v833 = vpack.c.b16 %v797, %v796
          %v834 = vpack.c.b16 %v799, %v798
          %v835 = vpack.c.b16 %v801, %v800
          %v836 = vpack.c.b16 %v803, %v802
          %v837 = vpack.c.b16 %v805, %v804
          %870 = vmatpush.bf16.msra.mxu0 %v813
          %871 = vmatpush.bf16.msra.mxu0 %v812
          %872 = vmatpush.bf16.msra.mxu0 %v811
          %873 = vmatpush.bf16.msra.mxu0 %v810
          %874 = vmatpush.bf16.msra.mxu0 %v809
          %875 = vmatpush.bf16.msra.mxu0 %v808
          %876 = vmatpush.bf16.msra.mxu0 %v807
          %877 = vmatpush.bf16.msra.mxu0 %v806
          %878 = vmatmul.bf16.gmra.mxu0 %v550
          %v879 = vpop.f32.mrf.mxu0
          %v880 = vadd.f32 %v356, %v879
          %v881 = vpop.f32.mrf.mxu0
          %v882 = vadd.f32 %v356, %v881
          %883 = vmatmul.bf16.gmra.mxu0 %v554
          %v884 = vpop.f32.mrf.mxu0
          %v885 = vadd.f32 %v356, %v884
          %v886 = vpop.f32.mrf.mxu0
          %v887 = vadd.f32 %v356, %v886
          %888 = vmatmul.bf16.gmra.mxu0 %v558
          %v889 = vpop.f32.mrf.mxu0
          %v890 = vadd.f32 %v356, %v889
          %v891 = vpop.f32.mrf.mxu0
          %v892 = vadd.f32 %v356, %v891
          %893 = vmatmul.bf16.gmra.mxu0 %v562
          %v894 = vpop.f32.mrf.mxu0
          %v895 = vadd.f32 %v356, %v894
          %v896 = vpop.f32.mrf.mxu0
          %v897 = vadd.f32 %v356, %v896
          %898 = vmatmul.bf16.gmra.mxu0 %v566
          %v899 = vpop.f32.mrf.mxu0
          %v900 = vadd.f32 %v356, %v899
          %v901 = vpop.f32.mrf.mxu0
          %v902 = vadd.f32 %v356, %v901
          %903 = vmatmul.bf16.gmra.mxu0 %v570
          %v904 = vpop.f32.mrf.mxu0
          %v905 = vadd.f32 %v356, %v904
          %v906 = vpop.f32.mrf.mxu0
          %v907 = vadd.f32 %v356, %v906
          %908 = vmatmul.bf16.gmra.mxu0 %v574
          %v909 = vpop.f32.mrf.mxu0
          %v910 = vadd.f32 %v356, %v909
          %v911 = vpop.f32.mrf.mxu0
          %v912 = vadd.f32 %v356, %v911
          %913 = vmatmul.bf16.gmra.mxu0 %v578
          %v914 = vpop.f32.mrf.mxu0
          %v915 = vadd.f32 %v356, %v914
          %v916 = vpop.f32.mrf.mxu0
          %v917 = vadd.f32 %v356, %v916
          %918 = vmatmul.bf16.gmra.mxu0 %v582
          %v919 = vpop.f32.mrf.mxu0
          %v920 = vadd.f32 %v356, %v919
          %v921 = vpop.f32.mrf.mxu0
          %v922 = vadd.f32 %v356, %v921
          %923 = vmatmul.bf16.gmra.mxu0 %v586
          %v924 = vpop.f32.mrf.mxu0
          %v925 = vadd.f32 %v356, %v924
          %v926 = vpop.f32.mrf.mxu0
          %v927 = vadd.f32 %v356, %v926
          %928 = vmatmul.bf16.gmra.mxu0 %v590
          %v929 = vpop.f32.mrf.mxu0
          %v930 = vadd.f32 %v356, %v929
          %v931 = vpop.f32.mrf.mxu0
          %v932 = vadd.f32 %v356, %v931
          %933 = vmatmul.bf16.gmra.mxu0 %v594
          %v934 = vpop.f32.mrf.mxu0
          %v935 = vadd.f32 %v356, %v934
          %v936 = vpop.f32.mrf.mxu0
          %v937 = vadd.f32 %v356, %v936
          %938 = vmatmul.bf16.gmra.mxu0 %v598
          %v939 = vpop.f32.mrf.mxu0
          %v940 = vadd.f32 %v356, %v939
          %v941 = vpop.f32.mrf.mxu0
          %v942 = vadd.f32 %v356, %v941
          %943 = vmatmul.bf16.gmra.mxu0 %v602
          %v944 = vpop.f32.mrf.mxu0
          %v945 = vadd.f32 %v356, %v944
          %v946 = vpop.f32.mrf.mxu0
          %v947 = vadd.f32 %v356, %v946
          %948 = vmatmul.bf16.gmra.mxu0 %v606
          %v949 = vpop.f32.mrf.mxu0
          %v950 = vadd.f32 %v356, %v949
          %v951 = vpop.f32.mrf.mxu0
          %v952 = vadd.f32 %v356, %v951
          %953 = vmatmul.bf16.gmra.mxu0 %v610
          %v954 = vpop.f32.mrf.mxu0
          %v955 = vadd.f32 %v356, %v954
          %v956 = vpop.f32.mrf.mxu0
          %v957 = vadd.f32 %v356, %v956
          %958 = vdwg.mxu0
          %959 = vmatpush.bf16.msra.mxu0 %v821
          %960 = vmatpush.bf16.msra.mxu0 %v820
          %961 = vmatpush.bf16.msra.mxu0 %v819
          %962 = vmatpush.bf16.msra.mxu0 %v818
          %963 = vmatpush.bf16.msra.mxu0 %v817
          %964 = vmatpush.bf16.msra.mxu0 %v816
          %965 = vmatpush.bf16.msra.mxu0 %v815
          %966 = vmatpush.bf16.msra.mxu0 %v814
          %967 = vmatmul.bf16.gmra.mxu0 %v551
          %v968 = vpop.f32.mrf.mxu0
          %v969 = vadd.f32 %v880, %v968
          %v970 = vpop.f32.mrf.mxu0
          %v971 = vadd.f32 %v882, %v970
          %972 = vmatmul.bf16.gmra.mxu0 %v555
          %v973 = vpop.f32.mrf.mxu0
          %v974 = vadd.f32 %v885, %v973
          %v975 = vpop.f32.mrf.mxu0
          %v976 = vadd.f32 %v887, %v975
          %977 = vmatmul.bf16.gmra.mxu0 %v559
          %v978 = vpop.f32.mrf.mxu0
          %v979 = vadd.f32 %v890, %v978
          %v980 = vpop.f32.mrf.mxu0
          %v981 = vadd.f32 %v892, %v980
          %982 = vmatmul.bf16.gmra.mxu0 %v563
          %v983 = vpop.f32.mrf.mxu0
          %v984 = vadd.f32 %v895, %v983
          %v985 = vpop.f32.mrf.mxu0
          %v986 = vadd.f32 %v897, %v985
          %987 = vmatmul.bf16.gmra.mxu0 %v567
          %v988 = vpop.f32.mrf.mxu0
          %v989 = vadd.f32 %v900, %v988
          %v990 = vpop.f32.mrf.mxu0
          %v991 = vadd.f32 %v902, %v990
          %992 = vmatmul.bf16.gmra.mxu0 %v571
          %v993 = vpop.f32.mrf.mxu0
          %v994 = vadd.f32 %v905, %v993
          %v995 = vpop.f32.mrf.mxu0
          %v996 = vadd.f32 %v907, %v995
          %997 = vmatmul.bf16.gmra.mxu0 %v575
          %v998 = vpop.f32.mrf.mxu0
          %v999 = vadd.f32 %v910, %v998
          %v1000 = vpop.f32.mrf.mxu0
          %v1001 = vadd.f32 %v912, %v1000
          %1002 = vmatmul.bf16.gmra.mxu0 %v579
          %v1003 = vpop.f32.mrf.mxu0
          %v1004 = vadd.f32 %v915, %v1003
          %v1005 = vpop.f32.mrf.mxu0
          %v1006 = vadd.f32 %v917, %v1005
          %1007 = vmatmul.bf16.gmra.mxu0 %v583
          %v1008 = vpop.f32.mrf.mxu0
          %v1009 = vadd.f32 %v920, %v1008
          %v1010 = vpop.f32.mrf.mxu0
          %v1011 = vadd.f32 %v922, %v1010
          %1012 = vmatmul.bf16.gmra.mxu0 %v587
          %v1013 = vpop.f32.mrf.mxu0
          %v1014 = vadd.f32 %v925, %v1013
          %v1015 = vpop.f32.mrf.mxu0
          %v1016 = vadd.f32 %v927, %v1015
          %1017 = vmatmul.bf16.gmra.mxu0 %v591
          %v1018 = vpop.f32.mrf.mxu0
          %v1019 = vadd.f32 %v930, %v1018
          %v1020 = vpop.f32.mrf.mxu0
          %v1021 = vadd.f32 %v932, %v1020
          %1022 = vmatmul.bf16.gmra.mxu0 %v595
          %v1023 = vpop.f32.mrf.mxu0
          %v1024 = vadd.f32 %v935, %v1023
          %v1025 = vpop.f32.mrf.mxu0
          %v1026 = vadd.f32 %v937, %v1025
          %1027 = vmatmul.bf16.gmra.mxu0 %v599
          %v1028 = vpop.f32.mrf.mxu0
          %v1029 = vadd.f32 %v940, %v1028
          %v1030 = vpop.f32.mrf.mxu0
          %v1031 = vadd.f32 %v942, %v1030
          %1032 = vmatmul.bf16.gmra.mxu0 %v603
          %v1033 = vpop.f32.mrf.mxu0
          %v1034 = vadd.f32 %v945, %v1033
          %v1035 = vpop.f32.mrf.mxu0
          %v1036 = vadd.f32 %v947, %v1035
          %1037 = vmatmul.bf16.gmra.mxu0 %v607
          %v1038 = vpop.f32.mrf.mxu0
          %v1039 = vadd.f32 %v950, %v1038
          %v1040 = vpop.f32.mrf.mxu0
          %v1041 = vadd.f32 %v952, %v1040
          %1042 = vmatmul.bf16.gmra.mxu0 %v611
          %v1043 = vpop.f32.mrf.mxu0
          %v1044 = vadd.f32 %v955, %v1043
          %v1045 = vpop.f32.mrf.mxu0
          %v1046 = vadd.f32 %v957, %v1045
          %1047 = vdwg.mxu0
          %1048 = vmatpush.bf16.msra.mxu0 %v829
          %1049 = vmatpush.bf16.msra.mxu0 %v828
          %1050 = vmatpush.bf16.msra.mxu0 %v827
          %1051 = vmatpush.bf16.msra.mxu0 %v826
          %1052 = vmatpush.bf16.msra.mxu0 %v825
          %1053 = vmatpush.bf16.msra.mxu0 %v824
          %1054 = vmatpush.bf16.msra.mxu0 %v823
          %1055 = vmatpush.bf16.msra.mxu0 %v822
          %1056 = vmatmul.bf16.gmra.mxu0 %v552
          %v1057 = vpop.f32.mrf.mxu0
          %v1058 = vadd.f32 %v969, %v1057
          %v1059 = vpop.f32.mrf.mxu0
          %v1060 = vadd.f32 %v971, %v1059
          %1061 = vmatmul.bf16.gmra.mxu0 %v556
          %v1062 = vpop.f32.mrf.mxu0
          %v1063 = vadd.f32 %v974, %v1062
          %v1064 = vpop.f32.mrf.mxu0
          %v1065 = vadd.f32 %v976, %v1064
          %1066 = vmatmul.bf16.gmra.mxu0 %v560
          %v1067 = vpop.f32.mrf.mxu0
          %v1068 = vadd.f32 %v979, %v1067
          %v1069 = vpop.f32.mrf.mxu0
          %v1070 = vadd.f32 %v981, %v1069
          %1071 = vmatmul.bf16.gmra.mxu0 %v564
          %v1072 = vpop.f32.mrf.mxu0
          %v1073 = vadd.f32 %v984, %v1072
          %v1074 = vpop.f32.mrf.mxu0
          %v1075 = vadd.f32 %v986, %v1074
          %1076 = vmatmul.bf16.gmra.mxu0 %v568
          %v1077 = vpop.f32.mrf.mxu0
          %v1078 = vadd.f32 %v989, %v1077
          %v1079 = vpop.f32.mrf.mxu0
          %v1080 = vadd.f32 %v991, %v1079
          %1081 = vmatmul.bf16.gmra.mxu0 %v572
          %v1082 = vpop.f32.mrf.mxu0
          %v1083 = vadd.f32 %v994, %v1082
          %v1084 = vpop.f32.mrf.mxu0
          %v1085 = vadd.f32 %v996, %v1084
          %1086 = vmatmul.bf16.gmra.mxu0 %v576
          %v1087 = vpop.f32.mrf.mxu0
          %v1088 = vadd.f32 %v999, %v1087
          %v1089 = vpop.f32.mrf.mxu0
          %v1090 = vadd.f32 %v1001, %v1089
          %1091 = vmatmul.bf16.gmra.mxu0 %v580
          %v1092 = vpop.f32.mrf.mxu0
          %v1093 = vadd.f32 %v1004, %v1092
          %v1094 = vpop.f32.mrf.mxu0
          %v1095 = vadd.f32 %v1006, %v1094
          %1096 = vmatmul.bf16.gmra.mxu0 %v584
          %v1097 = vpop.f32.mrf.mxu0
          %v1098 = vadd.f32 %v1009, %v1097
          %v1099 = vpop.f32.mrf.mxu0
          %v1100 = vadd.f32 %v1011, %v1099
          %1101 = vmatmul.bf16.gmra.mxu0 %v588
          %v1102 = vpop.f32.mrf.mxu0
          %v1103 = vadd.f32 %v1014, %v1102
          %v1104 = vpop.f32.mrf.mxu0
          %v1105 = vadd.f32 %v1016, %v1104
          %1106 = vmatmul.bf16.gmra.mxu0 %v592
          %v1107 = vpop.f32.mrf.mxu0
          %v1108 = vadd.f32 %v1019, %v1107
          %v1109 = vpop.f32.mrf.mxu0
          %v1110 = vadd.f32 %v1021, %v1109
          %1111 = vmatmul.bf16.gmra.mxu0 %v596
          %v1112 = vpop.f32.mrf.mxu0
          %v1113 = vadd.f32 %v1024, %v1112
          %v1114 = vpop.f32.mrf.mxu0
          %v1115 = vadd.f32 %v1026, %v1114
          %1116 = vmatmul.bf16.gmra.mxu0 %v600
          %v1117 = vpop.f32.mrf.mxu0
          %v1118 = vadd.f32 %v1029, %v1117
          %v1119 = vpop.f32.mrf.mxu0
          %v1120 = vadd.f32 %v1031, %v1119
          %1121 = vmatmul.bf16.gmra.mxu0 %v604
          %v1122 = vpop.f32.mrf.mxu0
          %v1123 = vadd.f32 %v1034, %v1122
          %v1124 = vpop.f32.mrf.mxu0
          %v1125 = vadd.f32 %v1036, %v1124
          %1126 = vmatmul.bf16.gmra.mxu0 %v608
          %v1127 = vpop.f32.mrf.mxu0
          %v1128 = vadd.f32 %v1039, %v1127
          %v1129 = vpop.f32.mrf.mxu0
          %v1130 = vadd.f32 %v1041, %v1129
          %1131 = vmatmul.bf16.gmra.mxu0 %v612
          %v1132 = vpop.f32.mrf.mxu0
          %v1133 = vadd.f32 %v1044, %v1132
          %v1134 = vpop.f32.mrf.mxu0
          %v1135 = vadd.f32 %v1046, %v1134
          %1136 = vdwg.mxu0
          %1137 = vmatpush.bf16.msra.mxu0 %v837
          %1138 = vmatpush.bf16.msra.mxu0 %v836
          %1139 = vmatpush.bf16.msra.mxu0 %v835
          %1140 = vmatpush.bf16.msra.mxu0 %v834
          %1141 = vmatpush.bf16.msra.mxu0 %v833
          %1142 = vmatpush.bf16.msra.mxu0 %v832
          %1143 = vmatpush.bf16.msra.mxu0 %v831
          %1144 = vmatpush.bf16.msra.mxu0 %v830
          %1145 = vmatmul.bf16.gmra.mxu0 %v553
          %v1146 = vpop.f32.mrf.mxu0
          %v1147 = vadd.f32 %v1058, %v1146
          %v1148 = vpop.f32.mrf.mxu0
          %v1149 = vadd.f32 %v1060, %v1148
          %1150 = vmatmul.bf16.gmra.mxu0 %v557
          %v1151 = vpop.f32.mrf.mxu0
          %v1152 = vadd.f32 %v1063, %v1151
          %v1153 = vpop.f32.mrf.mxu0
          %v1154 = vadd.f32 %v1065, %v1153
          %1155 = vmatmul.bf16.gmra.mxu0 %v561
          %v1156 = vpop.f32.mrf.mxu0
          %v1157 = vadd.f32 %v1068, %v1156
          %v1158 = vpop.f32.mrf.mxu0
          %v1159 = vadd.f32 %v1070, %v1158
          %1160 = vmatmul.bf16.gmra.mxu0 %v565
          %v1161 = vpop.f32.mrf.mxu0
          %v1162 = vadd.f32 %v1073, %v1161
          %v1163 = vpop.f32.mrf.mxu0
          %v1164 = vadd.f32 %v1075, %v1163
          %1165 = vmatmul.bf16.gmra.mxu0 %v569
          %v1166 = vpop.f32.mrf.mxu0
          %v1167 = vadd.f32 %v1078, %v1166
          %v1168 = vpop.f32.mrf.mxu0
          %v1169 = vadd.f32 %v1080, %v1168
          %1170 = vmatmul.bf16.gmra.mxu0 %v573
          %v1171 = vpop.f32.mrf.mxu0
          %v1172 = vadd.f32 %v1083, %v1171
          %v1173 = vpop.f32.mrf.mxu0
          %v1174 = vadd.f32 %v1085, %v1173
          %1175 = vmatmul.bf16.gmra.mxu0 %v577
          %v1176 = vpop.f32.mrf.mxu0
          %v1177 = vadd.f32 %v1088, %v1176
          %v1178 = vpop.f32.mrf.mxu0
          %v1179 = vadd.f32 %v1090, %v1178
          %1180 = vmatmul.bf16.gmra.mxu0 %v581
          %v1181 = vpop.f32.mrf.mxu0
          %v1182 = vadd.f32 %v1093, %v1181
          %v1183 = vpop.f32.mrf.mxu0
          %v1184 = vadd.f32 %v1095, %v1183
          %1185 = vmatmul.bf16.gmra.mxu0 %v585
          %v1186 = vpop.f32.mrf.mxu0
          %v1187 = vadd.f32 %v1098, %v1186
          %v1188 = vpop.f32.mrf.mxu0
          %v1189 = vadd.f32 %v1100, %v1188
          %1190 = vmatmul.bf16.gmra.mxu0 %v589
          %v1191 = vpop.f32.mrf.mxu0
          %v1192 = vadd.f32 %v1103, %v1191
          %v1193 = vpop.f32.mrf.mxu0
          %v1194 = vadd.f32 %v1105, %v1193
          %1195 = vmatmul.bf16.gmra.mxu0 %v593
          %v1196 = vpop.f32.mrf.mxu0
          %v1197 = vadd.f32 %v1108, %v1196
          %v1198 = vpop.f32.mrf.mxu0
          %v1199 = vadd.f32 %v1110, %v1198
          %1200 = vmatmul.bf16.gmra.mxu0 %v597
          %v1201 = vpop.f32.mrf.mxu0
          %v1202 = vadd.f32 %v1113, %v1201
          %v1203 = vpop.f32.mrf.mxu0
          %v1204 = vadd.f32 %v1115, %v1203
          %1205 = vmatmul.bf16.gmra.mxu0 %v601
          %v1206 = vpop.f32.mrf.mxu0
          %v1207 = vadd.f32 %v1118, %v1206
          %v1208 = vpop.f32.mrf.mxu0
          %v1209 = vadd.f32 %v1120, %v1208
          %1210 = vmatmul.bf16.gmra.mxu0 %v605
          %v1211 = vpop.f32.mrf.mxu0
          %v1212 = vadd.f32 %v1123, %v1211
          %v1213 = vpop.f32.mrf.mxu0
          %v1214 = vadd.f32 %v1125, %v1213
          %1215 = vmatmul.bf16.gmra.mxu0 %v609
          %v1216 = vpop.f32.mrf.mxu0
          %v1217 = vadd.f32 %v1128, %v1216
          %v1218 = vpop.f32.mrf.mxu0
          %v1219 = vadd.f32 %v1130, %v1218
          %1220 = vmatmul.bf16.gmra.mxu0 %v613
          %v1221 = vpop.f32.mrf.mxu0
          %v1222 = vadd.f32 %v1133, %v1221
          %v1223 = vpop.f32.mrf.mxu0
          %v1224 = vadd.f32 %v1135, %v1223
          %1225 = vdwg.mxu0
          %v1226 = vmax.f32 %v1147, 0.0
          %v1227 = vmax.f32 %v1149, 0.0
          %v1228 = vmax.f32 %v1152, 0.0
          %v1229 = vmax.f32 %v1154, 0.0
          %v1230 = vmax.f32 %v1157, 0.0
          %v1231 = vmax.f32 %v1159, 0.0
          %v1232 = vmax.f32 %v1162, 0.0
          %v1233 = vmax.f32 %v1164, 0.0
          %v1234 = vmax.f32 %v1167, 0.0
          %v1235 = vmax.f32 %v1169, 0.0
          %v1236 = vmax.f32 %v1172, 0.0
          %v1237 = vmax.f32 %v1174, 0.0
          %v1238 = vmax.f32 %v1177, 0.0
          %v1239 = vmax.f32 %v1179, 0.0
          %v1240 = vmax.f32 %v1182, 0.0
          %v1241 = vmax.f32 %v1184, 0.0
          %v1242 = vmax.f32 %v1187, 0.0
          %v1243 = vmax.f32 %v1189, 0.0
          %v1244 = vmax.f32 %v1192, 0.0
          %v1245 = vmax.f32 %v1194, 0.0
          %v1246 = vmax.f32 %v1197, 0.0
          %v1247 = vmax.f32 %v1199, 0.0
          %v1248 = vmax.f32 %v1202, 0.0
          %v1249 = vmax.f32 %v1204, 0.0
          %v1250 = vmax.f32 %v1207, 0.0
          %v1251 = vmax.f32 %v1209, 0.0
          %v1252 = vmax.f32 %v1212, 0.0
          %v1253 = vmax.f32 %v1214, 0.0
          %v1254 = vmax.f32 %v1217, 0.0
          %v1255 = vmax.f32 %v1219, 0.0
          %v1256 = vmax.f32 %v1222, 0.0
          %v1257 = vmax.f32 %v1224, 0.0
          %v1258 = vpack.c.bf16 %v1226, %v1226
          %v1259 = vpack.c.bf16 %v1227, %v1227
          %v1260 = vpack.c.bf16 %v1228, %v1228
          %v1261 = vpack.c.bf16 %v1229, %v1229
          %v1262 = vpack.c.bf16 %v1230, %v1230
          %v1263 = vpack.c.bf16 %v1231, %v1231
          %v1264 = vpack.c.bf16 %v1232, %v1232
          %v1265 = vpack.c.bf16 %v1233, %v1233
          %v1266 = vpack.c.bf16 %v1234, %v1234
          %v1267 = vpack.c.bf16 %v1235, %v1235
          %v1268 = vpack.c.bf16 %v1236, %v1236
          %v1269 = vpack.c.bf16 %v1237, %v1237
          %v1270 = vpack.c.bf16 %v1238, %v1238
          %v1271 = vpack.c.bf16 %v1239, %v1239
          %v1272 = vpack.c.bf16 %v1240, %v1240
          %v1273 = vpack.c.bf16 %v1241, %v1241
          %v1274 = vpack.c.bf16 %v1242, %v1242
          %v1275 = vpack.c.bf16 %v1243, %v1243
          %v1276 = vpack.c.bf16 %v1244, %v1244
          %v1277 = vpack.c.bf16 %v1245, %v1245
          %v1278 = vpack.c.bf16 %v1246, %v1246
          %v1279 = vpack.c.bf16 %v1247, %v1247
          %v1280 = vpack.c.bf16 %v1248, %v1248
          %v1281 = vpack.c.bf16 %v1249, %v1249
          %v1282 = vpack.c.bf16 %v1250, %v1250
          %v1283 = vpack.c.bf16 %v1251, %v1251
          %v1284 = vpack.c.bf16 %v1252, %v1252
          %v1285 = vpack.c.bf16 %v1253, %v1253
          %v1286 = vpack.c.bf16 %v1254, %v1254
          %v1287 = vpack.c.bf16 %v1255, %v1255
          %v1288 = vpack.c.bf16 %v1256, %v1256
          %v1289 = vpack.c.bf16 %v1257, %v1257
          %s1290 = smul.addr %s221, 4
          %s1291 = scalar_lea.vmem [#allocation3], %s1290
          %vm1292 = vcmask 125952
          %1293 = vst.msk [vmem:[%s1291] sm:$0xf] %vm1292, %v1258
          %1294 = vst.msk [vmem:[%s1291 + $0x4] sm:$0xf] %vm1292, %v1259
          %1295 = vst.msk [vmem:[%s1291 + $0x8] sm:$0xf] %vm1292, %v1260
          %1296 = vst.msk [vmem:[%s1291 + $0xc] sm:$0xf] %vm1292, %v1261
          %1297 = vst.msk [vmem:[%s1291 + $0x10] sm:$0xf] %vm1292, %v1262
          %1298 = vst.msk [vmem:[%s1291 + $0x14] sm:$0xf] %vm1292, %v1263
          %1299 = vst.msk [vmem:[%s1291 + $0x18] sm:$0xf] %vm1292, %v1264
          %1300 = vst.msk [vmem:[%s1291 + $0x1c] sm:$0xf] %vm1292, %v1265
          %1301 = vst.msk [vmem:[%s1291 + $0x20] sm:$0xf] %vm1292, %v1266
          %1302 = vst.msk [vmem:[%s1291 + $0x24] sm:$0xf] %vm1292, %v1267
          %1303 = vst.msk [vmem:[%s1291 + $0x28] sm:$0xf] %vm1292, %v1268
          %1304 = vst.msk [vmem:[%s1291 + $0x2c] sm:$0xf] %vm1292, %v1269
          %1305 = vst.msk [vmem:[%s1291 + $0x30] sm:$0xf] %vm1292, %v1270
          %1306 = vst.msk [vmem:[%s1291 + $0x34] sm:$0xf] %vm1292, %v1271
          %1307 = vst.msk [vmem:[%s1291 + $0x38] sm:$0xf] %vm1292, %v1272
          %1308 = vst.msk [vmem:[%s1291 + $0x3c] sm:$0xf] %vm1292, %v1273
          %1309 = vst.msk [vmem:[%s1291 + $0x40] sm:$0xf] %vm1292, %v1274
          %1310 = vst.msk [vmem:[%s1291 + $0x44] sm:$0xf] %vm1292, %v1275
          %1311 = vst.msk [vmem:[%s1291 + $0x48] sm:$0xf] %vm1292, %v1276
          %1312 = vst.msk [vmem:[%s1291 + $0x4c] sm:$0xf] %vm1292, %v1277
          %1313 = vst.msk [vmem:[%s1291 + $0x50] sm:$0xf] %vm1292, %v1278
          %1314 = vst.msk [vmem:[%s1291 + $0x54] sm:$0xf] %vm1292, %v1279
          %1315 = vst.msk [vmem:[%s1291 + $0x58] sm:$0xf] %vm1292, %v1280
          %1316 = vst.msk [vmem:[%s1291 + $0x5c] sm:$0xf] %vm1292, %v1281
          %1317 = vst.msk [vmem:[%s1291 + $0x60] sm:$0xf] %vm1292, %v1282
          %1318 = vst.msk [vmem:[%s1291 + $0x64] sm:$0xf] %vm1292, %v1283
          %1319 = vst.msk [vmem:[%s1291 + $0x68] sm:$0xf] %vm1292, %v1284
          %1320 = vst.msk [vmem:[%s1291 + $0x6c] sm:$0xf] %vm1292, %v1285
          %1321 = vst.msk [vmem:[%s1291 + $0x70] sm:$0xf] %vm1292, %v1286
          %1322 = vst.msk [vmem:[%s1291 + $0x74] sm:$0xf] %vm1292, %v1287
          %1323 = vst.msk [vmem:[%s1291 + $0x78] sm:$0xf] %vm1292, %v1288
          %1324 = vst.msk [vmem:[%s1291 + $0x7c] sm:$0xf] %vm1292, %v1289
        $region48: #{tpu_custom_call.1} parent=35 // pred_fallthru
          _
        %p1325 = scmp.eq.s32.totalorder %s23, 1
        // Predicated region
        $region49: #{tpu_custom_call.1} parent=35 // pred_check
          %p1326 = pneg %p1325
        $region50: #{tpu_custom_call.1} parent=35 // pred_check_branch
          %1328 = sbr.rel (%p1326) target = $region52
        $region51: #{tpu_custom_call.1} parent=35 // pred_region
          %s1329 = sshra.s32 %s217, 3
          %s1330 = sand.u32 %s217, 7
          %s1331 = smul.u32 %s1329, 4
          %s1332 = smul.addr %s1331, 4
          %s1333 = scalar_lea.vmem [#allocation2], %s1332
          %v1334 = vld [vmem:[%s1333] sm:$0xff]
          %v1335 = vld [vmem:[%s1333 + $0x8] sm:$0xff]
          %v1336 = vld [vmem:[%s1333 + $0x10] sm:$0xff]
          %v1337 = vld [vmem:[%s1333 + $0x18] sm:$0xff]
          %v1338 = vld [vmem:[%s1333 + $0x20] sm:$0xff]
          %v1339 = vld [vmem:[%s1333 + $0x28] sm:$0xff]
          %v1340 = vld [vmem:[%s1333 + $0x30] sm:$0xff]
          %v1341 = vld [vmem:[%s1333 + $0x38] sm:$0xff]
          %v1342 = vld [vmem:[%s1333 + $0x40] sm:$0xff]
          %v1343 = vld [vmem:[%s1333 + $0x48] sm:$0xff]
          %v1344 = vld [vmem:[%s1333 + $0x50] sm:$0xff]
          %v1345 = vld [vmem:[%s1333 + $0x58] sm:$0xff]
          %v1346 = vld [vmem:[%s1333 + $0x60] sm:$0xff]
          %v1347 = vld [vmem:[%s1333 + $0x68] sm:$0xff]
          %v1348 = vld [vmem:[%s1333 + $0x70] sm:$0xff]
          %v1349 = vld [vmem:[%s1333 + $0x78] sm:$0xff]
          %v1350 = vld [vmem:[%s1333 + $0x80] sm:$0xff]
          %v1351 = vld [vmem:[%s1333 + $0x88] sm:$0xff]
          %v1352 = vld [vmem:[%s1333 + $0x90] sm:$0xff]
          %v1353 = vld [vmem:[%s1333 + $0x98] sm:$0xff]
          %v1354 = vld [vmem:[%s1333 + $0xa0] sm:$0xff]
          %v1355 = vld [vmem:[%s1333 + $0xa8] sm:$0xff]
          %v1356 = vld [vmem:[%s1333 + $0xb0] sm:$0xff]
          %v1357 = vld [vmem:[%s1333 + $0xb8] sm:$0xff]
          %v1358 = vld [vmem:[%s1333 + $0xc0] sm:$0xff]
          %v1359 = vld [vmem:[%s1333 + $0xc8] sm:$0xff]
          %v1360 = vld [vmem:[%s1333 + $0xd0] sm:$0xff]
          %v1361 = vld [vmem:[%s1333 + $0xd8] sm:$0xff]
          %v1362 = vld [vmem:[%s1333 + $0xe0] sm:$0xff]
          %v1363 = vld [vmem:[%s1333 + $0xe8] sm:$0xff]
          %v1364 = vld [vmem:[%s1333 + $0xf0] sm:$0xff]
          %v1365 = vld [vmem:[%s1333 + $0xf8] sm:$0xff]
          %v1366 = vld [vmem:[%s1333 + $0x100] sm:$0xff]
          %v1367 = vld [vmem:[%s1333 + $0x108] sm:$0xff]
          %v1368 = vld [vmem:[%s1333 + $0x110] sm:$0xff]
          %v1369 = vld [vmem:[%s1333 + $0x118] sm:$0xff]
          %v1370 = vld [vmem:[%s1333 + $0x120] sm:$0xff]
          %v1371 = vld [vmem:[%s1333 + $0x128] sm:$0xff]
          %v1372 = vld [vmem:[%s1333 + $0x130] sm:$0xff]
          %v1373 = vld [vmem:[%s1333 + $0x138] sm:$0xff]
          %v1374 = vld [vmem:[%s1333 + $0x140] sm:$0xff]
          %v1375 = vld [vmem:[%s1333 + $0x148] sm:$0xff]
          %v1376 = vld [vmem:[%s1333 + $0x150] sm:$0xff]
          %v1377 = vld [vmem:[%s1333 + $0x158] sm:$0xff]
          %v1378 = vld [vmem:[%s1333 + $0x160] sm:$0xff]
          %v1379 = vld [vmem:[%s1333 + $0x168] sm:$0xff]
          %v1380 = vld [vmem:[%s1333 + $0x170] sm:$0xff]
          %v1381 = vld [vmem:[%s1333 + $0x178] sm:$0xff]
          %v1382 = vld [vmem:[%s1333 + $0x180] sm:$0xff]
          %v1383 = vld [vmem:[%s1333 + $0x188] sm:$0xff]
          %v1384 = vld [vmem:[%s1333 + $0x190] sm:$0xff]
          %v1385 = vld [vmem:[%s1333 + $0x198] sm:$0xff]
          %v1386 = vld [vmem:[%s1333 + $0x1a0] sm:$0xff]
          %v1387 = vld [vmem:[%s1333 + $0x1a8] sm:$0xff]
          %v1388 = vld [vmem:[%s1333 + $0x1b0] sm:$0xff]
          %v1389 = vld [vmem:[%s1333 + $0x1b8] sm:$0xff]
          %v1390 = vld [vmem:[%s1333 + $0x1c0] sm:$0xff]
          %v1391 = vld [vmem:[%s1333 + $0x1c8] sm:$0xff]
          %v1392 = vld [vmem:[%s1333 + $0x1d0] sm:$0xff]
          %v1393 = vld [vmem:[%s1333 + $0x1d8] sm:$0xff]
          %v1394 = vld [vmem:[%s1333 + $0x1e0] sm:$0xff]
          %v1395 = vld [vmem:[%s1333 + $0x1e8] sm:$0xff]
          %v1396 = vld [vmem:[%s1333 + $0x1f0] sm:$0xff]
          %v1397 = vld [vmem:[%s1333 + $0x1f8] sm:$0xff]
          %v1398 = vld [vmem:[#allocation3] sm:$0xf]
          %v1399 = vld [vmem:[#allocation3 + $0x4] sm:$0xf]
          %v1400 = vld [vmem:[#allocation3 + $0x8] sm:$0xf]
          %v1401 = vld [vmem:[#allocation3 + $0xc] sm:$0xf]
          %v1402 = vld [vmem:[#allocation3 + $0x10] sm:$0xf]
          %v1403 = vld [vmem:[#allocation3 + $0x14] sm:$0xf]
          %v1404 = vld [vmem:[#allocation3 + $0x18] sm:$0xf]
          %v1405 = vld [vmem:[#allocation3 + $0x1c] sm:$0xf]
          %v1406 = vld [vmem:[#allocation3 + $0x20] sm:$0xf]
          %v1407 = vld [vmem:[#allocation3 + $0x24] sm:$0xf]
          %v1408 = vld [vmem:[#allocation3 + $0x28] sm:$0xf]
          %v1409 = vld [vmem:[#allocation3 + $0x2c] sm:$0xf]
          %v1410 = vld [vmem:[#allocation3 + $0x30] sm:$0xf]
          %v1411 = vld [vmem:[#allocation3 + $0x34] sm:$0xf]
          %v1412 = vld [vmem:[#allocation3 + $0x38] sm:$0xf]
          %v1413 = vld [vmem:[#allocation3 + $0x3c] sm:$0xf]
          %v1414 = vld [vmem:[#allocation3 + $0x40] sm:$0xf]
          %v1415 = vld [vmem:[#allocation3 + $0x44] sm:$0xf]
          %v1416 = vld [vmem:[#allocation3 + $0x48] sm:$0xf]
          %v1417 = vld [vmem:[#allocation3 + $0x4c] sm:$0xf]
          %v1418 = vld [vmem:[#allocation3 + $0x50] sm:$0xf]
          %v1419 = vld [vmem:[#allocation3 + $0x54] sm:$0xf]
          %v1420 = vld [vmem:[#allocation3 + $0x58] sm:$0xf]
          %v1421 = vld [vmem:[#allocation3 + $0x5c] sm:$0xf]
          %v1422 = vld [vmem:[#allocation3 + $0x60] sm:$0xf]
          %v1423 = vld [vmem:[#allocation3 + $0x64] sm:$0xf]
          %v1424 = vld [vmem:[#allocation3 + $0x68] sm:$0xf]
          %v1425 = vld [vmem:[#allocation3 + $0x6c] sm:$0xf]
          %v1426 = vld [vmem:[#allocation3 + $0x70] sm:$0xf]
          %v1427 = vld [vmem:[#allocation3 + $0x74] sm:$0xf]
          %v1428 = vld [vmem:[#allocation3 + $0x78] sm:$0xf]
          %v1429 = vld [vmem:[#allocation3 + $0x7c] sm:$0xf]
          %v1430 = vld [vmem:[#allocation3 + $0x80] sm:$0xf]
          %v1431 = vld [vmem:[#allocation3 + $0x84] sm:$0xf]
          %v1432 = vld [vmem:[#allocation3 + $0x88] sm:$0xf]
          %v1433 = vld [vmem:[#allocation3 + $0x8c] sm:$0xf]
          %v1434 = vld [vmem:[#allocation3 + $0x90] sm:$0xf]
          %v1435 = vld [vmem:[#allocation3 + $0x94] sm:$0xf]
          %v1436 = vld [vmem:[#allocation3 + $0x98] sm:$0xf]
          %v1437 = vld [vmem:[#allocation3 + $0x9c] sm:$0xf]
          %v1438 = vld [vmem:[#allocation3 + $0xa0] sm:$0xf]
          %v1439 = vld [vmem:[#allocation3 + $0xa4] sm:$0xf]
          %v1440 = vld [vmem:[#allocation3 + $0xa8] sm:$0xf]
          %v1441 = vld [vmem:[#allocation3 + $0xac] sm:$0xf]
          %v1442 = vld [vmem:[#allocation3 + $0xb0] sm:$0xf]
          %v1443 = vld [vmem:[#allocation3 + $0xb4] sm:$0xf]
          %v1444 = vld [vmem:[#allocation3 + $0xb8] sm:$0xf]
          %v1445 = vld [vmem:[#allocation3 + $0xbc] sm:$0xf]
          %v1446 = vld [vmem:[#allocation3 + $0xc0] sm:$0xf]
          %v1447 = vld [vmem:[#allocation3 + $0xc4] sm:$0xf]
          %v1448 = vld [vmem:[#allocation3 + $0xc8] sm:$0xf]
          %v1449 = vld [vmem:[#allocation3 + $0xcc] sm:$0xf]
          %v1450 = vld [vmem:[#allocation3 + $0xd0] sm:$0xf]
          %v1451 = vld [vmem:[#allocation3 + $0xd4] sm:$0xf]
          %v1452 = vld [vmem:[#allocation3 + $0xd8] sm:$0xf]
          %v1453 = vld [vmem:[#allocation3 + $0xdc] sm:$0xf]
          %v1454 = vld [vmem:[#allocation3 + $0xe0] sm:$0xf]
          %v1455 = vld [vmem:[#allocation3 + $0xe4] sm:$0xf]
          %v1456 = vld [vmem:[#allocation3 + $0xe8] sm:$0xf]
          %v1457 = vld [vmem:[#allocation3 + $0xec] sm:$0xf]
          %v1458 = vld [vmem:[#allocation3 + $0xf0] sm:$0xf]
          %v1459 = vld [vmem:[#allocation3 + $0xf4] sm:$0xf]
          %v1460 = vld [vmem:[#allocation3 + $0xf8] sm:$0xf]
          %v1461 = vld [vmem:[#allocation3 + $0xfc] sm:$0xf]
          %v1526 = vunpack.c.l.b16 %v1334
          %v1527 = vunpack.c.h.b16 %v1334
          %v1528 = vunpack.c.l.b16 %v1335
          %v1529 = vunpack.c.h.b16 %v1335
          %v1530 = vunpack.c.l.b16 %v1336
          %v1531 = vunpack.c.h.b16 %v1336
          %v1532 = vunpack.c.l.b16 %v1337
          %v1533 = vunpack.c.h.b16 %v1337
          %v1534 = vunpack.c.l.b16 %v1338
          %v1535 = vunpack.c.h.b16 %v1338
          %v1536 = vunpack.c.l.b16 %v1339
          %v1537 = vunpack.c.h.b16 %v1339
          %v1538 = vunpack.c.l.b16 %v1340
          %v1539 = vunpack.c.h.b16 %v1340
          %v1540 = vunpack.c.l.b16 %v1341
          %v1541 = vunpack.c.h.b16 %v1341
          %v1542 = vunpack.c.l.b16 %v1342
          %v1543 = vunpack.c.h.b16 %v1342
          %v1544 = vunpack.c.l.b16 %v1343
          %v1545 = vunpack.c.h.b16 %v1343
          %v1546 = vunpack.c.l.b16 %v1344
          %v1547 = vunpack.c.h.b16 %v1344
          %v1548 = vunpack.c.l.b16 %v1345
          %v1549 = vunpack.c.h.b16 %v1345
          %v1550 = vunpack.c.l.b16 %v1346
          %v1551 = vunpack.c.h.b16 %v1346
          %v1552 = vunpack.c.l.b16 %v1347
          %v1553 = vunpack.c.h.b16 %v1347
          %v1554 = vunpack.c.l.b16 %v1348
          %v1555 = vunpack.c.h.b16 %v1348
          %v1556 = vunpack.c.l.b16 %v1349
          %v1557 = vunpack.c.h.b16 %v1349
          %v1558 = vunpack.c.l.b16 %v1350
          %v1559 = vunpack.c.h.b16 %v1350
          %v1560 = vunpack.c.l.b16 %v1351
          %v1561 = vunpack.c.h.b16 %v1351
          %v1562 = vunpack.c.l.b16 %v1352
          %v1563 = vunpack.c.h.b16 %v1352
          %v1564 = vunpack.c.l.b16 %v1353
          %v1565 = vunpack.c.h.b16 %v1353
          %v1566 = vunpack.c.l.b16 %v1354
          %v1567 = vunpack.c.h.b16 %v1354
          %v1568 = vunpack.c.l.b16 %v1355
          %v1569 = vunpack.c.h.b16 %v1355
          %v1570 = vunpack.c.l.b16 %v1356
          %v1571 = vunpack.c.h.b16 %v1356
          %v1572 = vunpack.c.l.b16 %v1357
          %v1573 = vunpack.c.h.b16 %v1357
          %v1574 = vunpack.c.l.b16 %v1358
          %v1575 = vunpack.c.h.b16 %v1358
          %v1576 = vunpack.c.l.b16 %v1359
          %v1577 = vunpack.c.h.b16 %v1359
          %v1578 = vunpack.c.l.b16 %v1360
          %v1579 = vunpack.c.h.b16 %v1360
          %v1580 = vunpack.c.l.b16 %v1361
          %v1581 = vunpack.c.h.b16 %v1361
          %v1582 = vunpack.c.l.b16 %v1362
          %v1583 = vunpack.c.h.b16 %v1362
          %v1584 = vunpack.c.l.b16 %v1363
          %v1585 = vunpack.c.h.b16 %v1363
          %v1586 = vunpack.c.l.b16 %v1364
          %v1587 = vunpack.c.h.b16 %v1364
          %v1588 = vunpack.c.l.b16 %v1365
          %v1589 = vunpack.c.h.b16 %v1365
          %v1590 = vunpack.c.l.b16 %v1366
          %v1591 = vunpack.c.h.b16 %v1366
          %v1592 = vunpack.c.l.b16 %v1367
          %v1593 = vunpack.c.h.b16 %v1367
          %v1594 = vunpack.c.l.b16 %v1368
          %v1595 = vunpack.c.h.b16 %v1368
          %v1596 = vunpack.c.l.b16 %v1369
          %v1597 = vunpack.c.h.b16 %v1369
          %v1598 = vunpack.c.l.b16 %v1370
          %v1599 = vunpack.c.h.b16 %v1370
          %v1600 = vunpack.c.l.b16 %v1371
          %v1601 = vunpack.c.h.b16 %v1371
          %v1602 = vunpack.c.l.b16 %v1372
          %v1603 = vunpack.c.h.b16 %v1372
          %v1604 = vunpack.c.l.b16 %v1373
          %v1605 = vunpack.c.h.b16 %v1373
          %v1606 = vunpack.c.l.b16 %v1374
          %v1607 = vunpack.c.h.b16 %v1374
          %v1608 = vunpack.c.l.b16 %v1375
          %v1609 = vunpack.c.h.b16 %v1375
          %v1610 = vunpack.c.l.b16 %v1376
          %v1611 = vunpack.c.h.b16 %v1376
          %v1612 = vunpack.c.l.b16 %v1377
          %v1613 = vunpack.c.h.b16 %v1377
          %v1614 = vunpack.c.l.b16 %v1378
          %v1615 = vunpack.c.h.b16 %v1378
          %v1616 = vunpack.c.l.b16 %v1379
          %v1617 = vunpack.c.h.b16 %v1379
          %v1618 = vunpack.c.l.b16 %v1380
          %v1619 = vunpack.c.h.b16 %v1380
          %v1620 = vunpack.c.l.b16 %v1381
          %v1621 = vunpack.c.h.b16 %v1381
          %v1622 = vunpack.c.l.b16 %v1382
          %v1623 = vunpack.c.h.b16 %v1382
          %v1624 = vunpack.c.l.b16 %v1383
          %v1625 = vunpack.c.h.b16 %v1383
          %v1626 = vunpack.c.l.b16 %v1384
          %v1627 = vunpack.c.h.b16 %v1384
          %v1628 = vunpack.c.l.b16 %v1385
          %v1629 = vunpack.c.h.b16 %v1385
          %v1630 = vunpack.c.l.b16 %v1386
          %v1631 = vunpack.c.h.b16 %v1386
          %v1632 = vunpack.c.l.b16 %v1387
          %v1633 = vunpack.c.h.b16 %v1387
          %v1634 = vunpack.c.l.b16 %v1388
          %v1635 = vunpack.c.h.b16 %v1388
          %v1636 = vunpack.c.l.b16 %v1389
          %v1637 = vunpack.c.h.b16 %v1389
          %v1638 = vunpack.c.l.b16 %v1390
          %v1639 = vunpack.c.h.b16 %v1390
          %v1640 = vunpack.c.l.b16 %v1391
          %v1641 = vunpack.c.h.b16 %v1391
          %v1642 = vunpack.c.l.b16 %v1392
          %v1643 = vunpack.c.h.b16 %v1392
          %v1644 = vunpack.c.l.b16 %v1393
          %v1645 = vunpack.c.h.b16 %v1393
          %v1646 = vunpack.c.l.b16 %v1394
          %v1647 = vunpack.c.h.b16 %v1394
          %v1648 = vunpack.c.l.b16 %v1395
          %v1649 = vunpack.c.h.b16 %v1395
          %v1650 = vunpack.c.l.b16 %v1396
          %v1651 = vunpack.c.h.b16 %v1396
          %v1652 = vunpack.c.l.b16 %v1397
          %v1653 = vunpack.c.h.b16 %v1397
          %v1654 = vpack.c.b16 %v1530, %v1526
          %v1655 = vpack.c.b16 %v1531, %v1527
          %v1656 = vpack.c.b16 %v1532, %v1528
          %v1657 = vpack.c.b16 %v1533, %v1529
          %v1658 = vpack.c.b16 %v1538, %v1534
          %v1659 = vpack.c.b16 %v1539, %v1535
          %v1660 = vpack.c.b16 %v1540, %v1536
          %v1661 = vpack.c.b16 %v1541, %v1537
          %v1662 = vpack.c.b16 %v1546, %v1542
          %v1663 = vpack.c.b16 %v1547, %v1543
          %v1664 = vpack.c.b16 %v1548, %v1544
          %v1665 = vpack.c.b16 %v1549, %v1545
          %v1666 = vpack.c.b16 %v1554, %v1550
          %v1667 = vpack.c.b16 %v1555, %v1551
          %v1668 = vpack.c.b16 %v1556, %v1552
          %v1669 = vpack.c.b16 %v1557, %v1553
          %v1670 = vpack.c.b16 %v1562, %v1558
          %v1671 = vpack.c.b16 %v1563, %v1559
          %v1672 = vpack.c.b16 %v1564, %v1560
          %v1673 = vpack.c.b16 %v1565, %v1561
          %v1674 = vpack.c.b16 %v1570, %v1566
          %v1675 = vpack.c.b16 %v1571, %v1567
          %v1676 = vpack.c.b16 %v1572, %v1568
          %v1677 = vpack.c.b16 %v1573, %v1569
          %v1678 = vpack.c.b16 %v1578, %v1574
          %v1679 = vpack.c.b16 %v1579, %v1575
          %v1680 = vpack.c.b16 %v1580, %v1576
          %v1681 = vpack.c.b16 %v1581, %v1577
          %v1682 = vpack.c.b16 %v1586, %v1582
          %v1683 = vpack.c.b16 %v1587, %v1583
          %v1684 = vpack.c.b16 %v1588, %v1584
          %v1685 = vpack.c.b16 %v1589, %v1585
          %v1686 = vpack.c.b16 %v1594, %v1590
          %v1687 = vpack.c.b16 %v1595, %v1591
          %v1688 = vpack.c.b16 %v1596, %v1592
          %v1689 = vpack.c.b16 %v1597, %v1593
          %v1690 = vpack.c.b16 %v1602, %v1598
          %v1691 = vpack.c.b16 %v1603, %v1599
          %v1692 = vpack.c.b16 %v1604, %v1600
          %v1693 = vpack.c.b16 %v1605, %v1601
          %v1694 = vpack.c.b16 %v1610, %v1606
          %v1695 = vpack.c.b16 %v1611, %v1607
          %v1696 = vpack.c.b16 %v1612, %v1608
          %v1697 = vpack.c.b16 %v1613, %v1609
          %v1698 = vpack.c.b16 %v1618, %v1614
          %v1699 = vpack.c.b16 %v1619, %v1615
          %v1700 = vpack.c.b16 %v1620, %v1616
          %v1701 = vpack.c.b16 %v1621, %v1617
          %v1702 = vpack.c.b16 %v1626, %v1622
          %v1703 = vpack.c.b16 %v1627, %v1623
          %v1704 = vpack.c.b16 %v1628, %v1624
          %v1705 = vpack.c.b16 %v1629, %v1625
          %v1706 = vpack.c.b16 %v1634, %v1630
          %v1707 = vpack.c.b16 %v1635, %v1631
          %v1708 = vpack.c.b16 %v1636, %v1632
          %v1709 = vpack.c.b16 %v1637, %v1633
          %v1710 = vpack.c.b16 %v1642, %v1638
          %v1711 = vpack.c.b16 %v1643, %v1639
          %v1712 = vpack.c.b16 %v1644, %v1640
          %v1713 = vpack.c.b16 %v1645, %v1641
          %v1714 = vpack.c.b16 %v1650, %v1646
          %v1715 = vpack.c.b16 %v1651, %v1647
          %v1716 = vpack.c.b16 %v1652, %v1648
          %v1717 = vpack.c.b16 %v1653, %v1649
          %v1846 = vunpack.c.l.b16 %v1398
          %v1847 = vunpack.c.l.b16 %v1399
          %v1848 = vunpack.c.l.b16 %v1400
          %v1849 = vunpack.c.l.b16 %v1401
          %v1850 = vunpack.c.l.b16 %v1402
          %v1851 = vunpack.c.l.b16 %v1403
          %v1852 = vunpack.c.l.b16 %v1404
          %v1853 = vunpack.c.l.b16 %v1405
          %v1854 = vunpack.c.l.b16 %v1406
          %v1855 = vunpack.c.l.b16 %v1407
          %v1856 = vunpack.c.l.b16 %v1408
          %v1857 = vunpack.c.l.b16 %v1409
          %v1858 = vunpack.c.l.b16 %v1410
          %v1859 = vunpack.c.l.b16 %v1411
          %v1860 = vunpack.c.l.b16 %v1412
          %v1861 = vunpack.c.l.b16 %v1413
          %v1862 = vunpack.c.l.b16 %v1414
          %v1863 = vunpack.c.l.b16 %v1415
          %v1864 = vunpack.c.l.b16 %v1416
          %v1865 = vunpack.c.l.b16 %v1417
          %v1866 = vunpack.c.l.b16 %v1418
          %v1867 = vunpack.c.l.b16 %v1419
          %v1868 = vunpack.c.l.b16 %v1420
          %v1869 = vunpack.c.l.b16 %v1421
          %v1870 = vunpack.c.l.b16 %v1422
          %v1871 = vunpack.c.l.b16 %v1423
          %v1872 = vunpack.c.l.b16 %v1424
          %v1873 = vunpack.c.l.b16 %v1425
          %v1874 = vunpack.c.l.b16 %v1426
          %v1875 = vunpack.c.l.b16 %v1427
          %v1876 = vunpack.c.l.b16 %v1428
          %v1877 = vunpack.c.l.b16 %v1429
          %v1878 = vunpack.c.l.b16 %v1430
          %v1879 = vunpack.c.l.b16 %v1431
          %v1880 = vunpack.c.l.b16 %v1432
          %v1881 = vunpack.c.l.b16 %v1433
          %v1882 = vunpack.c.l.b16 %v1434
          %v1883 = vunpack.c.l.b16 %v1435
          %v1884 = vunpack.c.l.b16 %v1436
          %v1885 = vunpack.c.l.b16 %v1437
          %v1886 = vunpack.c.l.b16 %v1438
          %v1887 = vunpack.c.l.b16 %v1439
          %v1888 = vunpack.c.l.b16 %v1440
          %v1889 = vunpack.c.l.b16 %v1441
          %v1890 = vunpack.c.l.b16 %v1442
          %v1891 = vunpack.c.l.b16 %v1443
          %v1892 = vunpack.c.l.b16 %v1444
          %v1893 = vunpack.c.l.b16 %v1445
          %v1894 = vunpack.c.l.b16 %v1446
          %v1895 = vunpack.c.l.b16 %v1447
          %v1896 = vunpack.c.l.b16 %v1448
          %v1897 = vunpack.c.l.b16 %v1449
          %v1898 = vunpack.c.l.b16 %v1450
          %v1899 = vunpack.c.l.b16 %v1451
          %v1900 = vunpack.c.l.b16 %v1452
          %v1901 = vunpack.c.l.b16 %v1453
          %v1902 = vunpack.c.l.b16 %v1454
          %v1903 = vunpack.c.l.b16 %v1455
          %v1904 = vunpack.c.l.b16 %v1456
          %v1905 = vunpack.c.l.b16 %v1457
          %v1906 = vunpack.c.l.b16 %v1458
          %v1907 = vunpack.c.l.b16 %v1459
          %v1908 = vunpack.c.l.b16 %v1460
          %v1909 = vunpack.c.l.b16 %v1461
          %v1910 = vpack.c.b16 %v1847, %v1846
          %v1911 = vpack.c.b16 %v1849, %v1848
          %v1912 = vpack.c.b16 %v1851, %v1850
          %v1913 = vpack.c.b16 %v1853, %v1852
          %v1914 = vpack.c.b16 %v1855, %v1854
          %v1915 = vpack.c.b16 %v1857, %v1856
          %v1916 = vpack.c.b16 %v1859, %v1858
          %v1917 = vpack.c.b16 %v1861, %v1860
          %v1918 = vpack.c.b16 %v1863, %v1862
          %v1919 = vpack.c.b16 %v1865, %v1864
          %v1920 = vpack.c.b16 %v1867, %v1866
          %v1921 = vpack.c.b16 %v1869, %v1868
          %v1922 = vpack.c.b16 %v1871, %v1870
          %v1923 = vpack.c.b16 %v1873, %v1872
          %v1924 = vpack.c.b16 %v1875, %v1874
          %v1925 = vpack.c.b16 %v1877, %v1876
          %v1926 = vpack.c.b16 %v1879, %v1878
          %v1927 = vpack.c.b16 %v1881, %v1880
          %v1928 = vpack.c.b16 %v1883, %v1882
          %v1929 = vpack.c.b16 %v1885, %v1884
          %v1930 = vpack.c.b16 %v1887, %v1886
          %v1931 = vpack.c.b16 %v1889, %v1888
          %v1932 = vpack.c.b16 %v1891, %v1890
          %v1933 = vpack.c.b16 %v1893, %v1892
          %v1934 = vpack.c.b16 %v1895, %v1894
          %v1935 = vpack.c.b16 %v1897, %v1896
          %v1936 = vpack.c.b16 %v1899, %v1898
          %v1937 = vpack.c.b16 %v1901, %v1900
          %v1938 = vpack.c.b16 %v1903, %v1902
          %v1939 = vpack.c.b16 %v1905, %v1904
          %v1940 = vpack.c.b16 %v1907, %v1906
          %v1941 = vpack.c.b16 %v1909, %v1908
          %1974 = vmatpush.bf16.msra.mxu0 %v1917
          %1975 = vmatpush.bf16.msra.mxu0 %v1916
          %1976 = vmatpush.bf16.msra.mxu0 %v1915
          %1977 = vmatpush.bf16.msra.mxu0 %v1914
          %1978 = vmatpush.bf16.msra.mxu0 %v1913
          %1979 = vmatpush.bf16.msra.mxu0 %v1912
          %1980 = vmatpush.bf16.msra.mxu0 %v1911
          %1981 = vmatpush.bf16.msra.mxu0 %v1910
          %1982 = vmatmul.bf16.gmra.mxu0 %v1654
          %v1983 = vpop.f32.mrf.mxu0
          %v1984 = vadd.f32 0.0, %v1983
          %v1985 = vpop.f32.mrf.mxu0
          %v1986 = vadd.f32 0.0, %v1985
          %1987 = vmatmul.bf16.gmra.mxu0 %v1658
          %v1988 = vpop.f32.mrf.mxu0
          %v1989 = vadd.f32 0.0, %v1988
          %v1990 = vpop.f32.mrf.mxu0
          %v1991 = vadd.f32 0.0, %v1990
          %1992 = vmatmul.bf16.gmra.mxu0 %v1662
          %v1993 = vpop.f32.mrf.mxu0
          %v1994 = vadd.f32 0.0, %v1993
          %v1995 = vpop.f32.mrf.mxu0
          %v1996 = vadd.f32 0.0, %v1995
          %1997 = vmatmul.bf16.gmra.mxu0 %v1666
          %v1998 = vpop.f32.mrf.mxu0
          %v1999 = vadd.f32 0.0, %v1998
          %v2000 = vpop.f32.mrf.mxu0
          %v2001 = vadd.f32 0.0, %v2000
          %2002 = vmatmul.bf16.gmra.mxu0 %v1670
          %v2003 = vpop.f32.mrf.mxu0
          %v2004 = vadd.f32 0.0, %v2003
          %v2005 = vpop.f32.mrf.mxu0
          %v2006 = vadd.f32 0.0, %v2005
          %2007 = vmatmul.bf16.gmra.mxu0 %v1674
          %v2008 = vpop.f32.mrf.mxu0
          %v2009 = vadd.f32 0.0, %v2008
          %v2010 = vpop.f32.mrf.mxu0
          %v2011 = vadd.f32 0.0, %v2010
          %2012 = vmatmul.bf16.gmra.mxu0 %v1678
          %v2013 = vpop.f32.mrf.mxu0
          %v2014 = vadd.f32 0.0, %v2013
          %v2015 = vpop.f32.mrf.mxu0
          %v2016 = vadd.f32 0.0, %v2015
          %2017 = vmatmul.bf16.gmra.mxu0 %v1682
          %v2018 = vpop.f32.mrf.mxu0
          %v2019 = vadd.f32 0.0, %v2018
          %v2020 = vpop.f32.mrf.mxu0
          %v2021 = vadd.f32 0.0, %v2020
          %2022 = vmatmul.bf16.gmra.mxu0 %v1686
          %v2023 = vpop.f32.mrf.mxu0
          %v2024 = vadd.f32 0.0, %v2023
          %v2025 = vpop.f32.mrf.mxu0
          %v2026 = vadd.f32 0.0, %v2025
          %2027 = vmatmul.bf16.gmra.mxu0 %v1690
          %v2028 = vpop.f32.mrf.mxu0
          %v2029 = vadd.f32 0.0, %v2028
          %v2030 = vpop.f32.mrf.mxu0
          %v2031 = vadd.f32 0.0, %v2030
          %2032 = vmatmul.bf16.gmra.mxu0 %v1694
          %v2033 = vpop.f32.mrf.mxu0
          %v2034 = vadd.f32 0.0, %v2033
          %v2035 = vpop.f32.mrf.mxu0
          %v2036 = vadd.f32 0.0, %v2035
          %2037 = vmatmul.bf16.gmra.mxu0 %v1698
          %v2038 = vpop.f32.mrf.mxu0
          %v2039 = vadd.f32 0.0, %v2038
          %v2040 = vpop.f32.mrf.mxu0
          %v2041 = vadd.f32 0.0, %v2040
          %2042 = vmatmul.bf16.gmra.mxu0 %v1702
          %v2043 = vpop.f32.mrf.mxu0
          %v2044 = vadd.f32 0.0, %v2043
          %v2045 = vpop.f32.mrf.mxu0
          %v2046 = vadd.f32 0.0, %v2045
          %2047 = vmatmul.bf16.gmra.mxu0 %v1706
          %v2048 = vpop.f32.mrf.mxu0
          %v2049 = vadd.f32 0.0, %v2048
          %v2050 = vpop.f32.mrf.mxu0
          %v2051 = vadd.f32 0.0, %v2050
          %2052 = vmatmul.bf16.gmra.mxu0 %v1710
          %v2053 = vpop.f32.mrf.mxu0
          %v2054 = vadd.f32 0.0, %v2053
          %v2055 = vpop.f32.mrf.mxu0
          %v2056 = vadd.f32 0.0, %v2055
          %2057 = vmatmul.bf16.gmra.mxu0 %v1714
          %v2058 = vpop.f32.mrf.mxu0
          %v2059 = vadd.f32 0.0, %v2058
          %v2060 = vpop.f32.mrf.mxu0
          %v2061 = vadd.f32 0.0, %v2060
          %2062 = vdwg.mxu0
          %2063 = vmatpush.bf16.msra.mxu0 %v1925
          %2064 = vmatpush.bf16.msra.mxu0 %v1924
          %2065 = vmatpush.bf16.msra.mxu0 %v1923
          %2066 = vmatpush.bf16.msra.mxu0 %v1922
          %2067 = vmatpush.bf16.msra.mxu0 %v1921
          %2068 = vmatpush.bf16.msra.mxu0 %v1920
          %2069 = vmatpush.bf16.msra.mxu0 %v1919
          %2070 = vmatpush.bf16.msra.mxu0 %v1918
          %2071 = vmatmul.bf16.gmra.mxu0 %v1655
          %v2072 = vpop.f32.mrf.mxu0
          %v2073 = vadd.f32 %v1984, %v2072
          %v2074 = vpop.f32.mrf.mxu0
          %v2075 = vadd.f32 %v1986, %v2074
          %2076 = vmatmul.bf16.gmra.mxu0 %v1659
          %v2077 = vpop.f32.mrf.mxu0
          %v2078 = vadd.f32 %v1989, %v2077
          %v2079 = vpop.f32.mrf.mxu0
          %v2080 = vadd.f32 %v1991, %v2079
          %2081 = vmatmul.bf16.gmra.mxu0 %v1663
          %v2082 = vpop.f32.mrf.mxu0
          %v2083 = vadd.f32 %v1994, %v2082
          %v2084 = vpop.f32.mrf.mxu0
          %v2085 = vadd.f32 %v1996, %v2084
          %2086 = vmatmul.bf16.gmra.mxu0 %v1667
          %v2087 = vpop.f32.mrf.mxu0
          %v2088 = vadd.f32 %v1999, %v2087
          %v2089 = vpop.f32.mrf.mxu0
          %v2090 = vadd.f32 %v2001, %v2089
          %2091 = vmatmul.bf16.gmra.mxu0 %v1671
          %v2092 = vpop.f32.mrf.mxu0
          %v2093 = vadd.f32 %v2004, %v2092
          %v2094 = vpop.f32.mrf.mxu0
          %v2095 = vadd.f32 %v2006, %v2094
          %2096 = vmatmul.bf16.gmra.mxu0 %v1675
          %v2097 = vpop.f32.mrf.mxu0
          %v2098 = vadd.f32 %v2009, %v2097
          %v2099 = vpop.f32.mrf.mxu0
          %v2100 = vadd.f32 %v2011, %v2099
          %2101 = vmatmul.bf16.gmra.mxu0 %v1679
          %v2102 = vpop.f32.mrf.mxu0
          %v2103 = vadd.f32 %v2014, %v2102
          %v2104 = vpop.f32.mrf.mxu0
          %v2105 = vadd.f32 %v2016, %v2104
          %2106 = vmatmul.bf16.gmra.mxu0 %v1683
          %v2107 = vpop.f32.mrf.mxu0
          %v2108 = vadd.f32 %v2019, %v2107
          %v2109 = vpop.f32.mrf.mxu0
          %v2110 = vadd.f32 %v2021, %v2109
          %2111 = vmatmul.bf16.gmra.mxu0 %v1687
          %v2112 = vpop.f32.mrf.mxu0
          %v2113 = vadd.f32 %v2024, %v2112
          %v2114 = vpop.f32.mrf.mxu0
          %v2115 = vadd.f32 %v2026, %v2114
          %2116 = vmatmul.bf16.gmra.mxu0 %v1691
          %v2117 = vpop.f32.mrf.mxu0
          %v2118 = vadd.f32 %v2029, %v2117
          %v2119 = vpop.f32.mrf.mxu0
          %v2120 = vadd.f32 %v2031, %v2119
          %2121 = vmatmul.bf16.gmra.mxu0 %v1695
          %v2122 = vpop.f32.mrf.mxu0
          %v2123 = vadd.f32 %v2034, %v2122
          %v2124 = vpop.f32.mrf.mxu0
          %v2125 = vadd.f32 %v2036, %v2124
          %2126 = vmatmul.bf16.gmra.mxu0 %v1699
          %v2127 = vpop.f32.mrf.mxu0
          %v2128 = vadd.f32 %v2039, %v2127
          %v2129 = vpop.f32.mrf.mxu0
          %v2130 = vadd.f32 %v2041, %v2129
          %2131 = vmatmul.bf16.gmra.mxu0 %v1703
          %v2132 = vpop.f32.mrf.mxu0
          %v2133 = vadd.f32 %v2044, %v2132
          %v2134 = vpop.f32.mrf.mxu0
          %v2135 = vadd.f32 %v2046, %v2134
          %2136 = vmatmul.bf16.gmra.mxu0 %v1707
          %v2137 = vpop.f32.mrf.mxu0
          %v2138 = vadd.f32 %v2049, %v2137
          %v2139 = vpop.f32.mrf.mxu0
          %v2140 = vadd.f32 %v2051, %v2139
          %2141 = vmatmul.bf16.gmra.mxu0 %v1711
          %v2142 = vpop.f32.mrf.mxu0
          %v2143 = vadd.f32 %v2054, %v2142
          %v2144 = vpop.f32.mrf.mxu0
          %v2145 = vadd.f32 %v2056, %v2144
          %2146 = vmatmul.bf16.gmra.mxu0 %v1715
          %v2147 = vpop.f32.mrf.mxu0
          %v2148 = vadd.f32 %v2059, %v2147
          %v2149 = vpop.f32.mrf.mxu0
          %v2150 = vadd.f32 %v2061, %v2149
          %2151 = vdwg.mxu0
          %2152 = vmatpush.bf16.msra.mxu0 %v1933
          %2153 = vmatpush.bf16.msra.mxu0 %v1932
          %2154 = vmatpush.bf16.msra.mxu0 %v1931
          %2155 = vmatpush.bf16.msra.mxu0 %v1930
          %2156 = vmatpush.bf16.msra.mxu0 %v1929
          %2157 = vmatpush.bf16.msra.mxu0 %v1928
          %2158 = vmatpush.bf16.msra.mxu0 %v1927
          %2159 = vmatpush.bf16.msra.mxu0 %v1926
          %2160 = vmatmul.bf16.gmra.mxu0 %v1656
          %v2161 = vpop.f32.mrf.mxu0
          %v2162 = vadd.f32 %v2073, %v2161
          %v2163 = vpop.f32.mrf.mxu0
          %v2164 = vadd.f32 %v2075, %v2163
          %2165 = vmatmul.bf16.gmra.mxu0 %v1660
          %v2166 = vpop.f32.mrf.mxu0
          %v2167 = vadd.f32 %v2078, %v2166
          %v2168 = vpop.f32.mrf.mxu0
          %v2169 = vadd.f32 %v2080, %v2168
          %2170 = vmatmul.bf16.gmra.mxu0 %v1664
          %v2171 = vpop.f32.mrf.mxu0
          %v2172 = vadd.f32 %v2083, %v2171
          %v2173 = vpop.f32.mrf.mxu0
          %v2174 = vadd.f32 %v2085, %v2173
          %2175 = vmatmul.bf16.gmra.mxu0 %v1668
          %v2176 = vpop.f32.mrf.mxu0
          %v2177 = vadd.f32 %v2088, %v2176
          %v2178 = vpop.f32.mrf.mxu0
          %v2179 = vadd.f32 %v2090, %v2178
          %2180 = vmatmul.bf16.gmra.mxu0 %v1672
          %v2181 = vpop.f32.mrf.mxu0
          %v2182 = vadd.f32 %v2093, %v2181
          %v2183 = vpop.f32.mrf.mxu0
          %v2184 = vadd.f32 %v2095, %v2183
          %2185 = vmatmul.bf16.gmra.mxu0 %v1676
          %v2186 = vpop.f32.mrf.mxu0
          %v2187 = vadd.f32 %v2098, %v2186
          %v2188 = vpop.f32.mrf.mxu0
          %v2189 = vadd.f32 %v2100, %v2188
          %2190 = vmatmul.bf16.gmra.mxu0 %v1680
          %v2191 = vpop.f32.mrf.mxu0
          %v2192 = vadd.f32 %v2103, %v2191
          %v2193 = vpop.f32.mrf.mxu0
          %v2194 = vadd.f32 %v2105, %v2193
          %2195 = vmatmul.bf16.gmra.mxu0 %v1684
          %v2196 = vpop.f32.mrf.mxu0
          %v2197 = vadd.f32 %v2108, %v2196
          %v2198 = vpop.f32.mrf.mxu0
          %v2199 = vadd.f32 %v2110, %v2198
          %2200 = vmatmul.bf16.gmra.mxu0 %v1688
          %v2201 = vpop.f32.mrf.mxu0
          %v2202 = vadd.f32 %v2113, %v2201
          %v2203 = vpop.f32.mrf.mxu0
          %v2204 = vadd.f32 %v2115, %v2203
          %2205 = vmatmul.bf16.gmra.mxu0 %v1692
          %v2206 = vpop.f32.mrf.mxu0
          %v2207 = vadd.f32 %v2118, %v2206
          %v2208 = vpop.f32.mrf.mxu0
          %v2209 = vadd.f32 %v2120, %v2208
          %2210 = vmatmul.bf16.gmra.mxu0 %v1696
          %v2211 = vpop.f32.mrf.mxu0
          %v2212 = vadd.f32 %v2123, %v2211
          %v2213 = vpop.f32.mrf.mxu0
          %v2214 = vadd.f32 %v2125, %v2213
          %2215 = vmatmul.bf16.gmra.mxu0 %v1700
          %v2216 = vpop.f32.mrf.mxu0
          %v2217 = vadd.f32 %v2128, %v2216
          %v2218 = vpop.f32.mrf.mxu0
          %v2219 = vadd.f32 %v2130, %v2218
          %2220 = vmatmul.bf16.gmra.mxu0 %v1704
          %v2221 = vpop.f32.mrf.mxu0
          %v2222 = vadd.f32 %v2133, %v2221
          %v2223 = vpop.f32.mrf.mxu0
          %v2224 = vadd.f32 %v2135, %v2223
          %2225 = vmatmul.bf16.gmra.mxu0 %v1708
          %v2226 = vpop.f32.mrf.mxu0
          %v2227 = vadd.f32 %v2138, %v2226
          %v2228 = vpop.f32.mrf.mxu0
          %v2229 = vadd.f32 %v2140, %v2228
          %2230 = vmatmul.bf16.gmra.mxu0 %v1712
          %v2231 = vpop.f32.mrf.mxu0
          %v2232 = vadd.f32 %v2143, %v2231
          %v2233 = vpop.f32.mrf.mxu0
          %v2234 = vadd.f32 %v2145, %v2233
          %2235 = vmatmul.bf16.gmra.mxu0 %v1716
          %v2236 = vpop.f32.mrf.mxu0
          %v2237 = vadd.f32 %v2148, %v2236
          %v2238 = vpop.f32.mrf.mxu0
          %v2239 = vadd.f32 %v2150, %v2238
          %2240 = vdwg.mxu0
          %2241 = vmatpush.bf16.msra.mxu0 %v1941
          %2242 = vmatpush.bf16.msra.mxu0 %v1940
          %2243 = vmatpush.bf16.msra.mxu0 %v1939
          %2244 = vmatpush.bf16.msra.mxu0 %v1938
          %2245 = vmatpush.bf16.msra.mxu0 %v1937
          %2246 = vmatpush.bf16.msra.mxu0 %v1936
          %2247 = vmatpush.bf16.msra.mxu0 %v1935
          %2248 = vmatpush.bf16.msra.mxu0 %v1934
          %2249 = vmatmul.bf16.gmra.mxu0 %v1657
          %v2250 = vpop.f32.mrf.mxu0
          %v2251 = vadd.f32 %v2162, %v2250
          %v2252 = vpop.f32.mrf.mxu0
          %v2253 = vadd.f32 %v2164, %v2252
          %2254 = vmatmul.bf16.gmra.mxu0 %v1661
          %v2255 = vpop.f32.mrf.mxu0
          %v2256 = vadd.f32 %v2167, %v2255
          %v2257 = vpop.f32.mrf.mxu0
          %v2258 = vadd.f32 %v2169, %v2257
          %2259 = vmatmul.bf16.gmra.mxu0 %v1665
          %v2260 = vpop.f32.mrf.mxu0
          %v2261 = vadd.f32 %v2172, %v2260
          %v2262 = vpop.f32.mrf.mxu0
          %v2263 = vadd.f32 %v2174, %v2262
          %2264 = vmatmul.bf16.gmra.mxu0 %v1669
          %v2265 = vpop.f32.mrf.mxu0
          %v2266 = vadd.f32 %v2177, %v2265
          %v2267 = vpop.f32.mrf.mxu0
          %v2268 = vadd.f32 %v2179, %v2267
          %2269 = vmatmul.bf16.gmra.mxu0 %v1673
          %v2270 = vpop.f32.mrf.mxu0
          %v2271 = vadd.f32 %v2182, %v2270
          %v2272 = vpop.f32.mrf.mxu0
          %v2273 = vadd.f32 %v2184, %v2272
          %2274 = vmatmul.bf16.gmra.mxu0 %v1677
          %v2275 = vpop.f32.mrf.mxu0
          %v2276 = vadd.f32 %v2187, %v2275
          %v2277 = vpop.f32.mrf.mxu0
          %v2278 = vadd.f32 %v2189, %v2277
          %2279 = vmatmul.bf16.gmra.mxu0 %v1681
          %v2280 = vpop.f32.mrf.mxu0
          %v2281 = vadd.f32 %v2192, %v2280
          %v2282 = vpop.f32.mrf.mxu0
          %v2283 = vadd.f32 %v2194, %v2282
          %2284 = vmatmul.bf16.gmra.mxu0 %v1685
          %v2285 = vpop.f32.mrf.mxu0
          %v2286 = vadd.f32 %v2197, %v2285
          %v2287 = vpop.f32.mrf.mxu0
          %v2288 = vadd.f32 %v2199, %v2287
          %2289 = vmatmul.bf16.gmra.mxu0 %v1689
          %v2290 = vpop.f32.mrf.mxu0
          %v2291 = vadd.f32 %v2202, %v2290
          %v2292 = vpop.f32.mrf.mxu0
          %v2293 = vadd.f32 %v2204, %v2292
          %2294 = vmatmul.bf16.gmra.mxu0 %v1693
          %v2295 = vpop.f32.mrf.mxu0
          %v2296 = vadd.f32 %v2207, %v2295
          %v2297 = vpop.f32.mrf.mxu0
          %v2298 = vadd.f32 %v2209, %v2297
          %2299 = vmatmul.bf16.gmra.mxu0 %v1697
          %v2300 = vpop.f32.mrf.mxu0
          %v2301 = vadd.f32 %v2212, %v2300
          %v2302 = vpop.f32.mrf.mxu0
          %v2303 = vadd.f32 %v2214, %v2302
          %2304 = vmatmul.bf16.gmra.mxu0 %v1701
          %v2305 = vpop.f32.mrf.mxu0
          %v2306 = vadd.f32 %v2217, %v2305
          %v2307 = vpop.f32.mrf.mxu0
          %v2308 = vadd.f32 %v2219, %v2307
          %2309 = vmatmul.bf16.gmra.mxu0 %v1705
          %v2310 = vpop.f32.mrf.mxu0
          %v2311 = vadd.f32 %v2222, %v2310
          %v2312 = vpop.f32.mrf.mxu0
          %v2313 = vadd.f32 %v2224, %v2312
          %2314 = vmatmul.bf16.gmra.mxu0 %v1709
          %v2315 = vpop.f32.mrf.mxu0
          %v2316 = vadd.f32 %v2227, %v2315
          %v2317 = vpop.f32.mrf.mxu0
          %v2318 = vadd.f32 %v2229, %v2317
          %2319 = vmatmul.bf16.gmra.mxu0 %v1713
          %v2320 = vpop.f32.mrf.mxu0
          %v2321 = vadd.f32 %v2232, %v2320
          %v2322 = vpop.f32.mrf.mxu0
          %v2323 = vadd.f32 %v2234, %v2322
          %2324 = vmatmul.bf16.gmra.mxu0 %v1717
          %v2325 = vpop.f32.mrf.mxu0
          %v2326 = vadd.f32 %v2237, %v2325
          %v2327 = vpop.f32.mrf.mxu0
          %v2328 = vadd.f32 %v2239, %v2327
          %2329 = vdwg.mxu0
          %v2330 = vpack.c.bf16 %v2253, %v2251
          %v2331 = vpack.c.bf16 %v2258, %v2256
          %v2332 = vpack.c.bf16 %v2263, %v2261
          %v2333 = vpack.c.bf16 %v2268, %v2266
          %v2334 = vpack.c.bf16 %v2273, %v2271
          %v2335 = vpack.c.bf16 %v2278, %v2276
          %v2336 = vpack.c.bf16 %v2283, %v2281
          %v2337 = vpack.c.bf16 %v2288, %v2286
          %v2338 = vpack.c.bf16 %v2293, %v2291
          %v2339 = vpack.c.bf16 %v2298, %v2296
          %v2340 = vpack.c.bf16 %v2303, %v2301
          %v2341 = vpack.c.bf16 %v2308, %v2306
          %v2342 = vpack.c.bf16 %v2313, %v2311
          %v2343 = vpack.c.bf16 %v2318, %v2316
          %v2344 = vpack.c.bf16 %v2323, %v2321
          %v2345 = vpack.c.bf16 %v2328, %v2326
          %v2346 = vld [vmem:[%s3] sm:$0xf]
          %v2347 = vld [vmem:[%s3 + $0x4] sm:$0xf]
          %v2348 = vld [vmem:[%s4] sm:$0x1]
          %v2350 = vperm.slane %v2348, 0
          %v2354 = vunpack.c.l.b16 %v2346
          %v2355 = vunpack.c.l.b16 %v2347
          %v2356 = vpack.c.b16 %v2355, %v2354
          %vm2358 = vcmask 130048
          %v2360 = vsel %vm2358, %v2330, 0
          %v2363 = vsel %vm2358, %v2331, 0
          %v2366 = vsel %vm2358, %v2332, 0
          %v2369 = vsel %vm2358, %v2333, 0
          %v2372 = vsel %vm2358, %v2334, 0
          %v2375 = vsel %vm2358, %v2335, 0
          %v2378 = vsel %vm2358, %v2336, 0
          %v2381 = vsel %vm2358, %v2337, 0
          %v2384 = vsel %vm2358, %v2338, 0
          %v2387 = vsel %vm2358, %v2339, 0
          %v2390 = vsel %vm2358, %v2340, 0
          %v2393 = vsel %vm2358, %v2341, 0
          %v2396 = vsel %vm2358, %v2342, 0
          %v2399 = vsel %vm2358, %v2343, 0
          %v2402 = vsel %vm2358, %v2344, 0
          %v2405 = vsel %vm2358, %v2345, 0
          %2407 = vmatpush.bf16.msra.mxu0 0
          %2408 = vmatpush.bf16.msra.mxu0 0
          %2409 = vmatpush.bf16.msra.mxu0 0
          %2410 = vmatpush.bf16.msra.mxu0 0
          %2411 = vmatpush.bf16.msra.mxu0 0
          %2412 = vmatpush.bf16.msra.mxu0 0
          %2413 = vmatpush.bf16.msra.mxu0 0
          %2414 = vmatpush.bf16.msra.mxu0 %v2356
          %2415 = vmatmul.bf16.gmra.mxu0 %v2360
          %v2416 = vpop.f32.mrf.mxu0
          %v2417 = vadd.f32 %v2350, %v2416
          %v2418 = vpop.f32.mrf.mxu0
          %v2419 = vadd.f32 %v2350, %v2418
          %2420 = vmatmul.bf16.gmra.mxu0 %v2363
          %v2421 = vpop.f32.mrf.mxu0
          %v2422 = vadd.f32 %v2350, %v2421
          %v2423 = vpop.f32.mrf.mxu0
          %v2424 = vadd.f32 %v2350, %v2423
          %2425 = vmatmul.bf16.gmra.mxu0 %v2366
          %v2426 = vpop.f32.mrf.mxu0
          %v2427 = vadd.f32 %v2350, %v2426
          %v2428 = vpop.f32.mrf.mxu0
          %v2429 = vadd.f32 %v2350, %v2428
          %2430 = vmatmul.bf16.gmra.mxu0 %v2369
          %v2431 = vpop.f32.mrf.mxu0
          %v2432 = vadd.f32 %v2350, %v2431
          %v2433 = vpop.f32.mrf.mxu0
          %v2434 = vadd.f32 %v2350, %v2433
          %2435 = vmatmul.bf16.gmra.mxu0 %v2372
          %v2436 = vpop.f32.mrf.mxu0
          %v2437 = vadd.f32 %v2350, %v2436
          %v2438 = vpop.f32.mrf.mxu0
          %v2439 = vadd.f32 %v2350, %v2438
          %2440 = vmatmul.bf16.gmra.mxu0 %v2375
          %v2441 = vpop.f32.mrf.mxu0
          %v2442 = vadd.f32 %v2350, %v2441
          %v2443 = vpop.f32.mrf.mxu0
          %v2444 = vadd.f32 %v2350, %v2443
          %2445 = vmatmul.bf16.gmra.mxu0 %v2378
          %v2446 = vpop.f32.mrf.mxu0
          %v2447 = vadd.f32 %v2350, %v2446
          %v2448 = vpop.f32.mrf.mxu0
          %v2449 = vadd.f32 %v2350, %v2448
          %2450 = vmatmul.bf16.gmra.mxu0 %v2381
          %v2451 = vpop.f32.mrf.mxu0
          %v2452 = vadd.f32 %v2350, %v2451
          %v2453 = vpop.f32.mrf.mxu0
          %v2454 = vadd.f32 %v2350, %v2453
          %2455 = vmatmul.bf16.gmra.mxu0 %v2384
          %v2456 = vpop.f32.mrf.mxu0
          %v2457 = vadd.f32 %v2350, %v2456
          %v2458 = vpop.f32.mrf.mxu0
          %v2459 = vadd.f32 %v2350, %v2458
          %2460 = vmatmul.bf16.gmra.mxu0 %v2387
          %v2461 = vpop.f32.mrf.mxu0
          %v2462 = vadd.f32 %v2350, %v2461
          %v2463 = vpop.f32.mrf.mxu0
          %v2464 = vadd.f32 %v2350, %v2463
          %2465 = vmatmul.bf16.gmra.mxu0 %v2390
          %v2466 = vpop.f32.mrf.mxu0
          %v2467 = vadd.f32 %v2350, %v2466
          %v2468 = vpop.f32.mrf.mxu0
          %v2469 = vadd.f32 %v2350, %v2468
          %2470 = vmatmul.bf16.gmra.mxu0 %v2393
          %v2471 = vpop.f32.mrf.mxu0
          %v2472 = vadd.f32 %v2350, %v2471
          %v2473 = vpop.f32.mrf.mxu0
          %v2474 = vadd.f32 %v2350, %v2473
          %2475 = vmatmul.bf16.gmra.mxu0 %v2396
          %v2476 = vpop.f32.mrf.mxu0
          %v2477 = vadd.f32 %v2350, %v2476
          %v2478 = vpop.f32.mrf.mxu0
          %v2479 = vadd.f32 %v2350, %v2478
          %2480 = vmatmul.bf16.gmra.mxu0 %v2399
          %v2481 = vpop.f32.mrf.mxu0
          %v2482 = vadd.f32 %v2350, %v2481
          %v2483 = vpop.f32.mrf.mxu0
          %v2484 = vadd.f32 %v2350, %v2483
          %2485 = vmatmul.bf16.gmra.mxu0 %v2402
          %v2486 = vpop.f32.mrf.mxu0
          %v2487 = vadd.f32 %v2350, %v2486
          %v2488 = vpop.f32.mrf.mxu0
          %v2489 = vadd.f32 %v2350, %v2488
          %2490 = vmatmul.bf16.gmra.mxu0 %v2405
          %v2491 = vpop.f32.mrf.mxu0
          %v2492 = vadd.f32 %v2350, %v2491
          %v2493 = vpop.f32.mrf.mxu0
          %v2494 = vadd.f32 %v2350, %v2493
          %2495 = vdwg.mxu0
          %2528 = vrot.lane.b32.xlu0 %v2417, 127
          %v2529 = vpop.permute.xlu0 %2528
          %2530 = vrot.lane.b32.xlu0 %v2419, 127
          %v2531 = vpop.permute.xlu0 %2530
          %2532 = vrot.lane.b32.xlu0 %v2422, 127
          %v2533 = vpop.permute.xlu0 %2532
          %2534 = vrot.lane.b32.xlu0 %v2424, 127
          %v2535 = vpop.permute.xlu0 %2534
          %2536 = vrot.lane.b32.xlu0 %v2427, 127
          %v2537 = vpop.permute.xlu0 %2536
          %2538 = vrot.lane.b32.xlu0 %v2429, 127
          %v2539 = vpop.permute.xlu0 %2538
          %2540 = vrot.lane.b32.xlu0 %v2432, 127
          %v2541 = vpop.permute.xlu0 %2540
          %2542 = vrot.lane.b32.xlu0 %v2434, 127
          %v2543 = vpop.permute.xlu0 %2542
          %2544 = vrot.lane.b32.xlu0 %v2437, 127
          %v2545 = vpop.permute.xlu0 %2544
          %2546 = vrot.lane.b32.xlu0 %v2439, 127
          %v2547 = vpop.permute.xlu0 %2546
          %2548 = vrot.lane.b32.xlu0 %v2442, 127
          %v2549 = vpop.permute.xlu0 %2548
          %2550 = vrot.lane.b32.xlu0 %v2444, 127
          %v2551 = vpop.permute.xlu0 %2550
          %2552 = vrot.lane.b32.xlu0 %v2447, 127
          %v2553 = vpop.permute.xlu0 %2552
          %2554 = vrot.lane.b32.xlu0 %v2449, 127
          %v2555 = vpop.permute.xlu0 %2554
          %2556 = vrot.lane.b32.xlu0 %v2452, 127
          %v2557 = vpop.permute.xlu0 %2556
          %2558 = vrot.lane.b32.xlu0 %v2454, 127
          %v2559 = vpop.permute.xlu0 %2558
          %2560 = vrot.lane.b32.xlu0 %v2457, 127
          %v2561 = vpop.permute.xlu0 %2560
          %2562 = vrot.lane.b32.xlu0 %v2459, 127
          %v2563 = vpop.permute.xlu0 %2562
          %2564 = vrot.lane.b32.xlu0 %v2462, 127
          %v2565 = vpop.permute.xlu0 %2564
          %2566 = vrot.lane.b32.xlu0 %v2464, 127
          %v2567 = vpop.permute.xlu0 %2566
          %2568 = vrot.lane.b32.xlu0 %v2467, 127
          %v2569 = vpop.permute.xlu0 %2568
          %2570 = vrot.lane.b32.xlu0 %v2469, 127
          %v2571 = vpop.permute.xlu0 %2570
          %2572 = vrot.lane.b32.xlu0 %v2472, 127
          %v2573 = vpop.permute.xlu0 %2572
          %2574 = vrot.lane.b32.xlu0 %v2474, 127
          %v2575 = vpop.permute.xlu0 %2574
          %2576 = vrot.lane.b32.xlu0 %v2477, 127
          %v2577 = vpop.permute.xlu0 %2576
          %2578 = vrot.lane.b32.xlu0 %v2479, 127
          %v2579 = vpop.permute.xlu0 %2578
          %2580 = vrot.lane.b32.xlu0 %v2482, 127
          %v2581 = vpop.permute.xlu0 %2580
          %2582 = vrot.lane.b32.xlu0 %v2484, 127
          %v2583 = vpop.permute.xlu0 %2582
          %2584 = vrot.lane.b32.xlu0 %v2487, 127
          %v2585 = vpop.permute.xlu0 %2584
          %2586 = vrot.lane.b32.xlu0 %v2489, 127
          %v2587 = vpop.permute.xlu0 %2586
          %2588 = vrot.lane.b32.xlu0 %v2492, 127
          %v2589 = vpop.permute.xlu0 %2588
          %2590 = vrot.lane.b32.xlu0 %v2494, 127
          %v2591 = vpop.permute.xlu0 %2590
          %v2624 = vmax.f32 %v2417, %v2529
          %v2625 = vmax.f32 %v2419, %v2531
          %v2626 = vmax.f32 %v2422, %v2533
          %v2627 = vmax.f32 %v2424, %v2535
          %v2628 = vmax.f32 %v2427, %v2537
          %v2629 = vmax.f32 %v2429, %v2539
          %v2630 = vmax.f32 %v2432, %v2541
          %v2631 = vmax.f32 %v2434, %v2543
          %v2632 = vmax.f32 %v2437, %v2545
          %v2633 = vmax.f32 %v2439, %v2547
          %v2634 = vmax.f32 %v2442, %v2549
          %v2635 = vmax.f32 %v2444, %v2551
          %v2636 = vmax.f32 %v2447, %v2553
          %v2637 = vmax.f32 %v2449, %v2555
          %v2638 = vmax.f32 %v2452, %v2557
          %v2639 = vmax.f32 %v2454, %v2559
          %v2640 = vmax.f32 %v2457, %v2561
          %v2641 = vmax.f32 %v2459, %v2563
          %v2642 = vmax.f32 %v2462, %v2565
          %v2643 = vmax.f32 %v2464, %v2567
          %v2644 = vmax.f32 %v2467, %v2569
          %v2645 = vmax.f32 %v2469, %v2571
          %v2646 = vmax.f32 %v2472, %v2573
          %v2647 = vmax.f32 %v2474, %v2575
          %v2648 = vmax.f32 %v2477, %v2577
          %v2649 = vmax.f32 %v2479, %v2579
          %v2650 = vmax.f32 %v2482, %v2581
          %v2651 = vmax.f32 %v2484, %v2583
          %v2652 = vmax.f32 %v2487, %v2585
          %v2653 = vmax.f32 %v2489, %v2587
          %v2654 = vmax.f32 %v2492, %v2589
          %v2655 = vmax.f32 %v2494, %v2591
          %v2656 = vsub.f32 %v2417, %v2624
          %v2657 = vsub.f32 %v2419, %v2625
          %v2658 = vsub.f32 %v2422, %v2626
          %v2659 = vsub.f32 %v2424, %v2627
          %v2660 = vsub.f32 %v2427, %v2628
          %v2661 = vsub.f32 %v2429, %v2629
          %v2662 = vsub.f32 %v2432, %v2630
          %v2663 = vsub.f32 %v2434, %v2631
          %v2664 = vsub.f32 %v2437, %v2632
          %v2665 = vsub.f32 %v2439, %v2633
          %v2666 = vsub.f32 %v2442, %v2634
          %v2667 = vsub.f32 %v2444, %v2635
          %v2668 = vsub.f32 %v2447, %v2636
          %v2669 = vsub.f32 %v2449, %v2637
          %v2670 = vsub.f32 %v2452, %v2638
          %v2671 = vsub.f32 %v2454, %v2639
          %v2672 = vsub.f32 %v2457, %v2640
          %v2673 = vsub.f32 %v2459, %v2641
          %v2674 = vsub.f32 %v2462, %v2642
          %v2675 = vsub.f32 %v2464, %v2643
          %v2676 = vsub.f32 %v2467, %v2644
          %v2677 = vsub.f32 %v2469, %v2645
          %v2678 = vsub.f32 %v2472, %v2646
          %v2679 = vsub.f32 %v2474, %v2647
          %v2680 = vsub.f32 %v2477, %v2648
          %v2681 = vsub.f32 %v2479, %v2649
          %v2682 = vsub.f32 %v2482, %v2650
          %v2683 = vsub.f32 %v2484, %v2651
          %v2684 = vsub.f32 %v2487, %v2652
          %v2685 = vsub.f32 %v2489, %v2653
          %v2686 = vsub.f32 %v2492, %v2654
          %v2687 = vsub.f32 %v2494, %v2655
          %v2688 = vmul.f32 %v2656, 1.442695
          %v2689 = vpow.pop %v2688
          %v2690 = vmul.f32 %v2657, 1.442695
          %v2691 = vpow.pop %v2690
          %v2692 = vmul.f32 %v2658, 1.442695
          %v2693 = vpow.pop %v2692
          %v2694 = vmul.f32 %v2659, 1.442695
          %v2695 = vpow.pop %v2694
          %v2696 = vmul.f32 %v2660, 1.442695
          %v2697 = vpow.pop %v2696
          %v2698 = vmul.f32 %v2661, 1.442695
          %v2699 = vpow.pop %v2698
          %v2700 = vmul.f32 %v2662, 1.442695
          %v2701 = vpow.pop %v2700
          %v2702 = vmul.f32 %v2663, 1.442695
          %v2703 = vpow.pop %v2702
          %v2704 = vmul.f32 %v2664, 1.442695
          %v2705 = vpow.pop %v2704
          %v2706 = vmul.f32 %v2665, 1.442695
          %v2707 = vpow.pop %v2706
          %v2708 = vmul.f32 %v2666, 1.442695
          %v2709 = vpow.pop %v2708
          %v2710 = vmul.f32 %v2667, 1.442695
          %v2711 = vpow.pop %v2710
          %v2712 = vmul.f32 %v2668, 1.442695
          %v2713 = vpow.pop %v2712
          %v2714 = vmul.f32 %v2669, 1.442695
          %v2715 = vpow.pop %v2714
          %v2716 = vmul.f32 %v2670, 1.442695
          %v2717 = vpow.pop %v2716
          %v2718 = vmul.f32 %v2671, 1.442695
          %v2719 = vpow.pop %v2718
          %v2720 = vmul.f32 %v2672, 1.442695
          %v2721 = vpow.pop %v2720
          %v2722 = vmul.f32 %v2673, 1.442695
          %v2723 = vpow.pop %v2722
          %v2724 = vmul.f32 %v2674, 1.442695
          %v2725 = vpow.pop %v2724
          %v2726 = vmul.f32 %v2675, 1.442695
          %v2727 = vpow.pop %v2726
          %v2728 = vmul.f32 %v2676, 1.442695
          %v2729 = vpow.pop %v2728
          %v2730 = vmul.f32 %v2677, 1.442695
          %v2731 = vpow.pop %v2730
          %v2732 = vmul.f32 %v2678, 1.442695
          %v2733 = vpow.pop %v2732
          %v2734 = vmul.f32 %v2679, 1.442695
          %v2735 = vpow.pop %v2734
          %v2736 = vmul.f32 %v2680, 1.442695
          %v2737 = vpow.pop %v2736
          %v2738 = vmul.f32 %v2681, 1.442695
          %v2739 = vpow.pop %v2738
          %v2740 = vmul.f32 %v2682, 1.442695
          %v2741 = vpow.pop %v2740
          %v2742 = vmul.f32 %v2683, 1.442695
          %v2743 = vpow.pop %v2742
          %v2744 = vmul.f32 %v2684, 1.442695
          %v2745 = vpow.pop %v2744
          %v2746 = vmul.f32 %v2685, 1.442695
          %v2747 = vpow.pop %v2746
          %v2748 = vmul.f32 %v2686, 1.442695
          %v2749 = vpow.pop %v2748
          %v2750 = vmul.f32 %v2687, 1.442695
          %v2751 = vpow.pop %v2750
          %2784 = vrot.lane.b32.xlu0 %v2624, 1
          %v2785 = vpop.permute.xlu0 %2784
          %2786 = vrot.lane.b32.xlu0 %v2625, 1
          %v2787 = vpop.permute.xlu0 %2786
          %2788 = vrot.lane.b32.xlu0 %v2626, 1
          %v2789 = vpop.permute.xlu0 %2788
          %2790 = vrot.lane.b32.xlu0 %v2627, 1
          %v2791 = vpop.permute.xlu0 %2790
          %2792 = vrot.lane.b32.xlu0 %v2628, 1
          %v2793 = vpop.permute.xlu0 %2792
          %2794 = vrot.lane.b32.xlu0 %v2629, 1
          %v2795 = vpop.permute.xlu0 %2794
          %2796 = vrot.lane.b32.xlu0 %v2630, 1
          %v2797 = vpop.permute.xlu0 %2796
          %2798 = vrot.lane.b32.xlu0 %v2631, 1
          %v2799 = vpop.permute.xlu0 %2798
          %2800 = vrot.lane.b32.xlu0 %v2632, 1
          %v2801 = vpop.permute.xlu0 %2800
          %2802 = vrot.lane.b32.xlu0 %v2633, 1
          %v2803 = vpop.permute.xlu0 %2802
          %2804 = vrot.lane.b32.xlu0 %v2634, 1
          %v2805 = vpop.permute.xlu0 %2804
          %2806 = vrot.lane.b32.xlu0 %v2635, 1
          %v2807 = vpop.permute.xlu0 %2806
          %2808 = vrot.lane.b32.xlu0 %v2636, 1
          %v2809 = vpop.permute.xlu0 %2808
          %2810 = vrot.lane.b32.xlu0 %v2637, 1
          %v2811 = vpop.permute.xlu0 %2810
          %2812 = vrot.lane.b32.xlu0 %v2638, 1
          %v2813 = vpop.permute.xlu0 %2812
          %2814 = vrot.lane.b32.xlu0 %v2639, 1
          %v2815 = vpop.permute.xlu0 %2814
          %2816 = vrot.lane.b32.xlu0 %v2640, 1
          %v2817 = vpop.permute.xlu0 %2816
          %2818 = vrot.lane.b32.xlu0 %v2641, 1
          %v2819 = vpop.permute.xlu0 %2818
          %2820 = vrot.lane.b32.xlu0 %v2642, 1
          %v2821 = vpop.permute.xlu0 %2820
          %2822 = vrot.lane.b32.xlu0 %v2643, 1
          %v2823 = vpop.permute.xlu0 %2822
          %2824 = vrot.lane.b32.xlu0 %v2644, 1
          %v2825 = vpop.permute.xlu0 %2824
          %2826 = vrot.lane.b32.xlu0 %v2645, 1
          %v2827 = vpop.permute.xlu0 %2826
          %2828 = vrot.lane.b32.xlu0 %v2646, 1
          %v2829 = vpop.permute.xlu0 %2828
          %2830 = vrot.lane.b32.xlu0 %v2647, 1
          %v2831 = vpop.permute.xlu0 %2830
          %2832 = vrot.lane.b32.xlu0 %v2648, 1
          %v2833 = vpop.permute.xlu0 %2832
          %2834 = vrot.lane.b32.xlu0 %v2649, 1
          %v2835 = vpop.permute.xlu0 %2834
          %2836 = vrot.lane.b32.xlu0 %v2650, 1
          %v2837 = vpop.permute.xlu0 %2836
          %2838 = vrot.lane.b32.xlu0 %v2651, 1
          %v2839 = vpop.permute.xlu0 %2838
          %2840 = vrot.lane.b32.xlu0 %v2652, 1
          %v2841 = vpop.permute.xlu0 %2840
          %2842 = vrot.lane.b32.xlu0 %v2653, 1
          %v2843 = vpop.permute.xlu0 %2842
          %2844 = vrot.lane.b32.xlu0 %v2654, 1
          %v2845 = vpop.permute.xlu0 %2844
          %2846 = vrot.lane.b32.xlu0 %v2655, 1
          %v2847 = vpop.permute.xlu0 %2846
          %v2880 = vsub.f32 %v2417, %v2785
          %v2881 = vsub.f32 %v2419, %v2787
          %v2882 = vsub.f32 %v2422, %v2789
          %v2883 = vsub.f32 %v2424, %v2791
          %v2884 = vsub.f32 %v2427, %v2793
          %v2885 = vsub.f32 %v2429, %v2795
          %v2886 = vsub.f32 %v2432, %v2797
          %v2887 = vsub.f32 %v2434, %v2799
          %v2888 = vsub.f32 %v2437, %v2801
          %v2889 = vsub.f32 %v2439, %v2803
          %v2890 = vsub.f32 %v2442, %v2805
          %v2891 = vsub.f32 %v2444, %v2807
          %v2892 = vsub.f32 %v2447, %v2809
          %v2893 = vsub.f32 %v2449, %v2811
          %v2894 = vsub.f32 %v2452, %v2813
          %v2895 = vsub.f32 %v2454, %v2815
          %v2896 = vsub.f32 %v2457, %v2817
          %v2897 = vsub.f32 %v2459, %v2819
          %v2898 = vsub.f32 %v2462, %v2821
          %v2899 = vsub.f32 %v2464, %v2823
          %v2900 = vsub.f32 %v2467, %v2825
          %v2901 = vsub.f32 %v2469, %v2827
          %v2902 = vsub.f32 %v2472, %v2829
          %v2903 = vsub.f32 %v2474, %v2831
          %v2904 = vsub.f32 %v2477, %v2833
          %v2905 = vsub.f32 %v2479, %v2835
          %v2906 = vsub.f32 %v2482, %v2837
          %v2907 = vsub.f32 %v2484, %v2839
          %v2908 = vsub.f32 %v2487, %v2841
          %v2909 = vsub.f32 %v2489, %v2843
          %v2910 = vsub.f32 %v2492, %v2845
          %v2911 = vsub.f32 %v2494, %v2847
          %v2912 = vmul.f32 %v2880, 1.442695
          %v2913 = vpow.pop %v2912
          %v2914 = vmul.f32 %v2881, 1.442695
          %v2915 = vpow.pop %v2914
          %v2916 = vmul.f32 %v2882, 1.442695
          %v2917 = vpow.pop %v2916
          %v2918 = vmul.f32 %v2883, 1.442695
          %v2919 = vpow.pop %v2918
          %v2920 = vmul.f32 %v2884, 1.442695
          %v2921 = vpow.pop %v2920
          %v2922 = vmul.f32 %v2885, 1.442695
          %v2923 = vpow.pop %v2922
          %v2924 = vmul.f32 %v2886, 1.442695
          %v2925 = vpow.pop %v2924
          %v2926 = vmul.f32 %v2887, 1.442695
          %v2927 = vpow.pop %v2926
          %v2928 = vmul.f32 %v2888, 1.442695
          %v2929 = vpow.pop %v2928
          %v2930 = vmul.f32 %v2889, 1.442695
          %v2931 = vpow.pop %v2930
          %v2932 = vmul.f32 %v2890, 1.442695
          %v2933 = vpow.pop %v2932
          %v2934 = vmul.f32 %v2891, 1.442695
          %v2935 = vpow.pop %v2934
          %v2936 = vmul.f32 %v2892, 1.442695
          %v2937 = vpow.pop %v2936
          %v2938 = vmul.f32 %v2893, 1.442695
          %v2939 = vpow.pop %v2938
          %v2940 = vmul.f32 %v2894, 1.442695
          %v2941 = vpow.pop %v2940
          %v2942 = vmul.f32 %v2895, 1.442695
          %v2943 = vpow.pop %v2942
          %v2944 = vmul.f32 %v2896, 1.442695
          %v2945 = vpow.pop %v2944
          %v2946 = vmul.f32 %v2897, 1.442695
          %v2947 = vpow.pop %v2946
          %v2948 = vmul.f32 %v2898, 1.442695
          %v2949 = vpow.pop %v2948
          %v2950 = vmul.f32 %v2899, 1.442695
          %v2951 = vpow.pop %v2950
          %v2952 = vmul.f32 %v2900, 1.442695
          %v2953 = vpow.pop %v2952
          %v2954 = vmul.f32 %v2901, 1.442695
          %v2955 = vpow.pop %v2954
          %v2956 = vmul.f32 %v2902, 1.442695
          %v2957 = vpow.pop %v2956
          %v2958 = vmul.f32 %v2903, 1.442695
          %v2959 = vpow.pop %v2958
          %v2960 = vmul.f32 %v2904, 1.442695
          %v2961 = vpow.pop %v2960
          %v2962 = vmul.f32 %v2905, 1.442695
          %v2963 = vpow.pop %v2962
          %v2964 = vmul.f32 %v2906, 1.442695
          %v2965 = vpow.pop %v2964
          %v2966 = vmul.f32 %v2907, 1.442695
          %v2967 = vpow.pop %v2966
          %v2968 = vmul.f32 %v2908, 1.442695
          %v2969 = vpow.pop %v2968
          %v2970 = vmul.f32 %v2909, 1.442695
          %v2971 = vpow.pop %v2970
          %v2972 = vmul.f32 %v2910, 1.442695
          %v2973 = vpow.pop %v2972
          %v2974 = vmul.f32 %v2911, 1.442695
          %v2975 = vpow.pop %v2974
          %3008 = vrot.lane.b32.xlu0 %v2913, 127
          %v3009 = vpop.permute.xlu0 %3008
          %3010 = vrot.lane.b32.xlu0 %v2915, 127
          %v3011 = vpop.permute.xlu0 %3010
          %3012 = vrot.lane.b32.xlu0 %v2917, 127
          %v3013 = vpop.permute.xlu0 %3012
          %3014 = vrot.lane.b32.xlu0 %v2919, 127
          %v3015 = vpop.permute.xlu0 %3014
          %3016 = vrot.lane.b32.xlu0 %v2921, 127
          %v3017 = vpop.permute.xlu0 %3016
          %3018 = vrot.lane.b32.xlu0 %v2923, 127
          %v3019 = vpop.permute.xlu0 %3018
          %3020 = vrot.lane.b32.xlu0 %v2925, 127
          %v3021 = vpop.permute.xlu0 %3020
          %3022 = vrot.lane.b32.xlu0 %v2927, 127
          %v3023 = vpop.permute.xlu0 %3022
          %3024 = vrot.lane.b32.xlu0 %v2929, 127
          %v3025 = vpop.permute.xlu0 %3024
          %3026 = vrot.lane.b32.xlu0 %v2931, 127
          %v3027 = vpop.permute.xlu0 %3026
          %3028 = vrot.lane.b32.xlu0 %v2933, 127
          %v3029 = vpop.permute.xlu0 %3028
          %3030 = vrot.lane.b32.xlu0 %v2935, 127
          %v3031 = vpop.permute.xlu0 %3030
          %3032 = vrot.lane.b32.xlu0 %v2937, 127
          %v3033 = vpop.permute.xlu0 %3032
          %3034 = vrot.lane.b32.xlu0 %v2939, 127
          %v3035 = vpop.permute.xlu0 %3034
          %3036 = vrot.lane.b32.xlu0 %v2941, 127
          %v3037 = vpop.permute.xlu0 %3036
          %3038 = vrot.lane.b32.xlu0 %v2943, 127
          %v3039 = vpop.permute.xlu0 %3038
          %3040 = vrot.lane.b32.xlu0 %v2945, 127
          %v3041 = vpop.permute.xlu0 %3040
          %3042 = vrot.lane.b32.xlu0 %v2947, 127
          %v3043 = vpop.permute.xlu0 %3042
          %3044 = vrot.lane.b32.xlu0 %v2949, 127
          %v3045 = vpop.permute.xlu0 %3044
          %3046 = vrot.lane.b32.xlu0 %v2951, 127
          %v3047 = vpop.permute.xlu0 %3046
          %3048 = vrot.lane.b32.xlu0 %v2953, 127
          %v3049 = vpop.permute.xlu0 %3048
          %3050 = vrot.lane.b32.xlu0 %v2955, 127
          %v3051 = vpop.permute.xlu0 %3050
          %3052 = vrot.lane.b32.xlu0 %v2957, 127
          %v3053 = vpop.permute.xlu0 %3052
          %3054 = vrot.lane.b32.xlu0 %v2959, 127
          %v3055 = vpop.permute.xlu0 %3054
          %3056 = vrot.lane.b32.xlu0 %v2961, 127
          %v3057 = vpop.permute.xlu0 %3056
          %3058 = vrot.lane.b32.xlu0 %v2963, 127
          %v3059 = vpop.permute.xlu0 %3058
          %3060 = vrot.lane.b32.xlu0 %v2965, 127
          %v3061 = vpop.permute.xlu0 %3060
          %3062 = vrot.lane.b32.xlu0 %v2967, 127
          %v3063 = vpop.permute.xlu0 %3062
          %3064 = vrot.lane.b32.xlu0 %v2969, 127
          %v3065 = vpop.permute.xlu0 %3064
          %3066 = vrot.lane.b32.xlu0 %v2971, 127
          %v3067 = vpop.permute.xlu0 %3066
          %3068 = vrot.lane.b32.xlu0 %v2973, 127
          %v3069 = vpop.permute.xlu0 %3068
          %3070 = vrot.lane.b32.xlu0 %v2975, 127
          %v3071 = vpop.permute.xlu0 %3070
          %v3104 = vadd.f32 %v2689, %v3009
          %v3105 = vadd.f32 %v2691, %v3011
          %v3106 = vadd.f32 %v2693, %v3013
          %v3107 = vadd.f32 %v2695, %v3015
          %v3108 = vadd.f32 %v2697, %v3017
          %v3109 = vadd.f32 %v2699, %v3019
          %v3110 = vadd.f32 %v2701, %v3021
          %v3111 = vadd.f32 %v2703, %v3023
          %v3112 = vadd.f32 %v2705, %v3025
          %v3113 = vadd.f32 %v2707, %v3027
          %v3114 = vadd.f32 %v2709, %v3029
          %v3115 = vadd.f32 %v2711, %v3031
          %v3116 = vadd.f32 %v2713, %v3033
          %v3117 = vadd.f32 %v2715, %v3035
          %v3118 = vadd.f32 %v2717, %v3037
          %v3119 = vadd.f32 %v2719, %v3039
          %v3120 = vadd.f32 %v2721, %v3041
          %v3121 = vadd.f32 %v2723, %v3043
          %v3122 = vadd.f32 %v2725, %v3045
          %v3123 = vadd.f32 %v2727, %v3047
          %v3124 = vadd.f32 %v2729, %v3049
          %v3125 = vadd.f32 %v2731, %v3051
          %v3126 = vadd.f32 %v2733, %v3053
          %v3127 = vadd.f32 %v2735, %v3055
          %v3128 = vadd.f32 %v2737, %v3057
          %v3129 = vadd.f32 %v2739, %v3059
          %v3130 = vadd.f32 %v2741, %v3061
          %v3131 = vadd.f32 %v2743, %v3063
          %v3132 = vadd.f32 %v2745, %v3065
          %v3133 = vadd.f32 %v2747, %v3067
          %v3134 = vadd.f32 %v2749, %v3069
          %v3135 = vadd.f32 %v2751, %v3071
          %v3136 = vlog2.pop %v3104
          %v3137 = vmul.f32 %v3136, 0.6931472
          %v3138 = vlog2.pop %v3105
          %v3139 = vmul.f32 %v3138, 0.6931472
          %v3140 = vlog2.pop %v3106
          %v3141 = vmul.f32 %v3140, 0.6931472
          %v3142 = vlog2.pop %v3107
          %v3143 = vmul.f32 %v3142, 0.6931472
          %v3144 = vlog2.pop %v3108
          %v3145 = vmul.f32 %v3144, 0.6931472
          %v3146 = vlog2.pop %v3109
          %v3147 = vmul.f32 %v3146, 0.6931472
          %v3148 = vlog2.pop %v3110
          %v3149 = vmul.f32 %v3148, 0.6931472
          %v3150 = vlog2.pop %v3111
          %v3151 = vmul.f32 %v3150, 0.6931472
          %v3152 = vlog2.pop %v3112
          %v3153 = vmul.f32 %v3152, 0.6931472
          %v3154 = vlog2.pop %v3113
          %v3155 = vmul.f32 %v3154, 0.6931472
          %v3156 = vlog2.pop %v3114
          %v3157 = vmul.f32 %v3156, 0.6931472
          %v3158 = vlog2.pop %v3115
          %v3159 = vmul.f32 %v3158, 0.6931472
          %v3160 = vlog2.pop %v3116
          %v3161 = vmul.f32 %v3160, 0.6931472
          %v3162 = vlog2.pop %v3117
          %v3163 = vmul.f32 %v3162, 0.6931472
          %v3164 = vlog2.pop %v3118
          %v3165 = vmul.f32 %v3164, 0.6931472
          %v3166 = vlog2.pop %v3119
          %v3167 = vmul.f32 %v3166, 0.6931472
          %v3168 = vlog2.pop %v3120
          %v3169 = vmul.f32 %v3168, 0.6931472
          %v3170 = vlog2.pop %v3121
          %v3171 = vmul.f32 %v3170, 0.6931472
          %v3172 = vlog2.pop %v3122
          %v3173 = vmul.f32 %v3172, 0.6931472
          %v3174 = vlog2.pop %v3123
          %v3175 = vmul.f32 %v3174, 0.6931472
          %v3176 = vlog2.pop %v3124
          %v3177 = vmul.f32 %v3176, 0.6931472
          %v3178 = vlog2.pop %v3125
          %v3179 = vmul.f32 %v3178, 0.6931472
          %v3180 = vlog2.pop %v3126
          %v3181 = vmul.f32 %v3180, 0.6931472
          %v3182 = vlog2.pop %v3127
          %v3183 = vmul.f32 %v3182, 0.6931472
          %v3184 = vlog2.pop %v3128
          %v3185 = vmul.f32 %v3184, 0.6931472
          %v3186 = vlog2.pop %v3129
          %v3187 = vmul.f32 %v3186, 0.6931472
          %v3188 = vlog2.pop %v3130
          %v3189 = vmul.f32 %v3188, 0.6931472
          %v3190 = vlog2.pop %v3131
          %v3191 = vmul.f32 %v3190, 0.6931472
          %v3192 = vlog2.pop %v3132
          %v3193 = vmul.f32 %v3192, 0.6931472
          %v3194 = vlog2.pop %v3133
          %v3195 = vmul.f32 %v3194, 0.6931472
          %v3196 = vlog2.pop %v3134
          %v3197 = vmul.f32 %v3196, 0.6931472
          %v3198 = vlog2.pop %v3135
          %v3199 = vmul.f32 %v3198, 0.6931472
          %v3200 = vadd.f32 %v2624, %v3137
          %v3201 = vadd.f32 %v2625, %v3139
          %v3202 = vadd.f32 %v2626, %v3141
          %v3203 = vadd.f32 %v2627, %v3143
          %v3204 = vadd.f32 %v2628, %v3145
          %v3205 = vadd.f32 %v2629, %v3147
          %v3206 = vadd.f32 %v2630, %v3149
          %v3207 = vadd.f32 %v2631, %v3151
          %v3208 = vadd.f32 %v2632, %v3153
          %v3209 = vadd.f32 %v2633, %v3155
          %v3210 = vadd.f32 %v2634, %v3157
          %v3211 = vadd.f32 %v2635, %v3159
          %v3212 = vadd.f32 %v2636, %v3161
          %v3213 = vadd.f32 %v2637, %v3163
          %v3214 = vadd.f32 %v2638, %v3165
          %v3215 = vadd.f32 %v2639, %v3167
          %v3216 = vadd.f32 %v2640, %v3169
          %v3217 = vadd.f32 %v2641, %v3171
          %v3218 = vadd.f32 %v2642, %v3173
          %v3219 = vadd.f32 %v2643, %v3175
          %v3220 = vadd.f32 %v2644, %v3177
          %v3221 = vadd.f32 %v2645, %v3179
          %v3222 = vadd.f32 %v2646, %v3181
          %v3223 = vadd.f32 %v2647, %v3183
          %v3224 = vadd.f32 %v2648, %v3185
          %v3225 = vadd.f32 %v2649, %v3187
          %v3226 = vadd.f32 %v2650, %v3189
          %v3227 = vadd.f32 %v2651, %v3191
          %v3228 = vadd.f32 %v2652, %v3193
          %v3229 = vadd.f32 %v2653, %v3195
          %v3230 = vadd.f32 %v2654, %v3197
          %v3231 = vadd.f32 %v2655, %v3199
          %3233 = vset.pattern.permute.xlu0 0
          %3234 = vperm.xlu0 %3233, %v3200
          %v3235 = vpop.permute.xlu0 %3234
          %3238 = vset.pattern.permute.xlu0 0
          %3239 = vperm.xlu0 %3238, %v3201
          %v3240 = vpop.permute.xlu0 %3239
          %3243 = vset.pattern.permute.xlu0 0
          %3244 = vperm.xlu0 %3243, %v3202
          %v3245 = vpop.permute.xlu0 %3244
          %3248 = vset.pattern.permute.xlu0 0
          %3249 = vperm.xlu0 %3248, %v3203
          %v3250 = vpop.permute.xlu0 %3249
          %3253 = vset.pattern.permute.xlu0 0
          %3254 = vperm.xlu0 %3253, %v3204
          %v3255 = vpop.permute.xlu0 %3254
          %3258 = vset.pattern.permute.xlu0 0
          %3259 = vperm.xlu0 %3258, %v3205
          %v3260 = vpop.permute.xlu0 %3259
          %3263 = vset.pattern.permute.xlu0 0
          %3264 = vperm.xlu0 %3263, %v3206
          %v3265 = vpop.permute.xlu0 %3264
          %3268 = vset.pattern.permute.xlu0 0
          %3269 = vperm.xlu0 %3268, %v3207
          %v3270 = vpop.permute.xlu0 %3269
          %3273 = vset.pattern.permute.xlu0 0
          %3274 = vperm.xlu0 %3273, %v3208
          %v3275 = vpop.permute.xlu0 %3274
          %3278 = vset.pattern.permute.xlu0 0
          %3279 = vperm.xlu0 %3278, %v3209
          %v3280 = vpop.permute.xlu0 %3279
          %3283 = vset.pattern.permute.xlu0 0
          %3284 = vperm.xlu0 %3283, %v3210
          %v3285 = vpop.permute.xlu0 %3284
          %3288 = vset.pattern.permute.xlu0 0
          %3289 = vperm.xlu0 %3288, %v3211
          %v3290 = vpop.permute.xlu0 %3289
          %3293 = vset.pattern.permute.xlu0 0
          %3294 = vperm.xlu0 %3293, %v3212
          %v3295 = vpop.permute.xlu0 %3294
          %3298 = vset.pattern.permute.xlu0 0
          %3299 = vperm.xlu0 %3298, %v3213
          %v3300 = vpop.permute.xlu0 %3299
          %3303 = vset.pattern.permute.xlu0 0
          %3304 = vperm.xlu0 %3303, %v3214
          %v3305 = vpop.permute.xlu0 %3304
          %3308 = vset.pattern.permute.xlu0 0
          %3309 = vperm.xlu0 %3308, %v3215
          %v3310 = vpop.permute.xlu0 %3309
          %3313 = vset.pattern.permute.xlu0 0
          %3314 = vperm.xlu0 %3313, %v3216
          %v3315 = vpop.permute.xlu0 %3314
          %3318 = vset.pattern.permute.xlu0 0
          %3319 = vperm.xlu0 %3318, %v3217
          %v3320 = vpop.permute.xlu0 %3319
          %3323 = vset.pattern.permute.xlu0 0
          %3324 = vperm.xlu0 %3323, %v3218
          %v3325 = vpop.permute.xlu0 %3324
          %3328 = vset.pattern.permute.xlu0 0
          %3329 = vperm.xlu0 %3328, %v3219
          %v3330 = vpop.permute.xlu0 %3329
          %3333 = vset.pattern.permute.xlu0 0
          %3334 = vperm.xlu0 %3333, %v3220
          %v3335 = vpop.permute.xlu0 %3334
          %3338 = vset.pattern.permute.xlu0 0
          %3339 = vperm.xlu0 %3338, %v3221
          %v3340 = vpop.permute.xlu0 %3339
          %3343 = vset.pattern.permute.xlu0 0
          %3344 = vperm.xlu0 %3343, %v3222
          %v3345 = vpop.permute.xlu0 %3344
          %3348 = vset.pattern.permute.xlu0 0
          %3349 = vperm.xlu0 %3348, %v3223
          %v3350 = vpop.permute.xlu0 %3349
          %3353 = vset.pattern.permute.xlu0 0
          %3354 = vperm.xlu0 %3353, %v3224
          %v3355 = vpop.permute.xlu0 %3354
          %3358 = vset.pattern.permute.xlu0 0
          %3359 = vperm.xlu0 %3358, %v3225
          %v3360 = vpop.permute.xlu0 %3359
          %3363 = vset.pattern.permute.xlu0 0
          %3364 = vperm.xlu0 %3363, %v3226
          %v3365 = vpop.permute.xlu0 %3364
          %3368 = vset.pattern.permute.xlu0 0
          %3369 = vperm.xlu0 %3368, %v3227
          %v3370 = vpop.permute.xlu0 %3369
          %3373 = vset.pattern.permute.xlu0 0
          %3374 = vperm.xlu0 %3373, %v3228
          %v3375 = vpop.permute.xlu0 %3374
          %3378 = vset.pattern.permute.xlu0 0
          %3379 = vperm.xlu0 %3378, %v3229
          %v3380 = vpop.permute.xlu0 %3379
          %3383 = vset.pattern.permute.xlu0 0
          %3384 = vperm.xlu0 %3383, %v3230
          %v3385 = vpop.permute.xlu0 %3384
          %3388 = vset.pattern.permute.xlu0 0
          %3389 = vperm.xlu0 %3388, %v3231
          %v3390 = vpop.permute.xlu0 %3389
          %v3392 = vsub.f32 %v2417, %v3235
          %v3393 = vsub.f32 %v2419, %v3240
          %v3394 = vsub.f32 %v2422, %v3245
          %v3395 = vsub.f32 %v2424, %v3250
          %v3396 = vsub.f32 %v2427, %v3255
          %v3397 = vsub.f32 %v2429, %v3260
          %v3398 = vsub.f32 %v2432, %v3265
          %v3399 = vsub.f32 %v2434, %v3270
          %v3400 = vsub.f32 %v2437, %v3275
          %v3401 = vsub.f32 %v2439, %v3280
          %v3402 = vsub.f32 %v2442, %v3285
          %v3403 = vsub.f32 %v2444, %v3290
          %v3404 = vsub.f32 %v2447, %v3295
          %v3405 = vsub.f32 %v2449, %v3300
          %v3406 = vsub.f32 %v2452, %v3305
          %v3407 = vsub.f32 %v2454, %v3310
          %v3408 = vsub.f32 %v2457, %v3315
          %v3409 = vsub.f32 %v2459, %v3320
          %v3410 = vsub.f32 %v2462, %v3325
          %v3411 = vsub.f32 %v2464, %v3330
          %v3412 = vsub.f32 %v2467, %v3335
          %v3413 = vsub.f32 %v2469, %v3340
          %v3414 = vsub.f32 %v2472, %v3345
          %v3415 = vsub.f32 %v2474, %v3350
          %v3416 = vsub.f32 %v2477, %v3355
          %v3417 = vsub.f32 %v2479, %v3360
          %v3418 = vsub.f32 %v2482, %v3365
          %v3419 = vsub.f32 %v2484, %v3370
          %v3420 = vsub.f32 %v2487, %v3375
          %v3421 = vsub.f32 %v2489, %v3380
          %v3422 = vsub.f32 %v2492, %v3385
          %v3423 = vsub.f32 %v2494, %v3390
          %3424 = vst [vmem:[%s190] sm:$0xff] %v3392
          %3425 = vst [vmem:[%s190 + $0x8] sm:$0xff] %v3393
          %3426 = vst [vmem:[%s190 + $0x10] sm:$0xff] %v3394
          %3427 = vst [vmem:[%s190 + $0x18] sm:$0xff] %v3395
          %3428 = vst [vmem:[%s190 + $0x20] sm:$0xff] %v3396
          %3429 = vst [vmem:[%s190 + $0x28] sm:$0xff] %v3397
          %3430 = vst [vmem:[%s190 + $0x30] sm:$0xff] %v3398
          %3431 = vst [vmem:[%s190 + $0x38] sm:$0xff] %v3399
          %3432 = vst [vmem:[%s190 + $0x40] sm:$0xff] %v3400
          %3433 = vst [vmem:[%s190 + $0x48] sm:$0xff] %v3401
          %3434 = vst [vmem:[%s190 + $0x50] sm:$0xff] %v3402
          %3435 = vst [vmem:[%s190 + $0x58] sm:$0xff] %v3403
          %3436 = vst [vmem:[%s190 + $0x60] sm:$0xff] %v3404
          %3437 = vst [vmem:[%s190 + $0x68] sm:$0xff] %v3405
          %3438 = vst [vmem:[%s190 + $0x70] sm:$0xff] %v3406
          %3439 = vst [vmem:[%s190 + $0x78] sm:$0xff] %v3407
          %3440 = vst [vmem:[%s190 + $0x80] sm:$0xff] %v3408
          %3441 = vst [vmem:[%s190 + $0x88] sm:$0xff] %v3409
          %3442 = vst [vmem:[%s190 + $0x90] sm:$0xff] %v3410
          %3443 = vst [vmem:[%s190 + $0x98] sm:$0xff] %v3411
          %3444 = vst [vmem:[%s190 + $0xa0] sm:$0xff] %v3412
          %3445 = vst [vmem:[%s190 + $0xa8] sm:$0xff] %v3413
          %3446 = vst [vmem:[%s190 + $0xb0] sm:$0xff] %v3414
          %3447 = vst [vmem:[%s190 + $0xb8] sm:$0xff] %v3415
          %3448 = vst [vmem:[%s190 + $0xc0] sm:$0xff] %v3416
          %3449 = vst [vmem:[%s190 + $0xc8] sm:$0xff] %v3417
          %3450 = vst [vmem:[%s190 + $0xd0] sm:$0xff] %v3418
          %3451 = vst [vmem:[%s190 + $0xd8] sm:$0xff] %v3419
          %3452 = vst [vmem:[%s190 + $0xe0] sm:$0xff] %v3420
          %3453 = vst [vmem:[%s190 + $0xe8] sm:$0xff] %v3421
          %3454 = vst [vmem:[%s190 + $0xf0] sm:$0xff] %v3422
          %3455 = vst [vmem:[%s190 + $0xf8] sm:$0xff] %v3423
        $region52: #{tpu_custom_call.1} parent=35 // pred_fallthru
          _
        %s3456 = sand.u32 %s125, 1
        %s3457 = scalar_lea.sflag [#allocation6], %s3456
        %s3458 = sand.u32 %s125, 1
        %s3459 = smul.addr %s3458, 256
        %s3460 = scalar_lea.vmem [#allocation5], %s3459
        // Predicated region
        $region53: #{tpu_custom_call.1} parent=35 // pred_check
          %p3461 = pneg %p135
        $region54: #{tpu_custom_call.1} parent=35 // pred_check_branch
          %3463 = sbr.rel (%p3461) target = $region56
        $region55: #{tpu_custom_call.1} parent=35 // pred_region
          %s3464 = smul.u32 %s24, %s23
          %s3465 = smul.u32 32, %s3464
          %3467 = vsyncadd %s3457, 0
          %s3468 = smul.addr %s3465, 8
          %s3469 = scalar_lea.hbm %s5, %s3468
          %s3470 = sshll.u32 %s3460, 4
          %s3471 = int_to_ptr.vmem [resolvable:$true] %s3470
          %s3472 = sshll.u32 %s3469, 4
          %s3473 = int_to_ptr.hbm [resolvable:$true] %s3472
          %3478 = dma.vmem_to_hbm [thread:$0]  %s3471, 4096, %s3473, %s3457, 128, 128, 8
        $region56: #{tpu_custom_call.1} parent=35 // pred_fallthru
          _
      $region36: #{tpu_custom_call.1} parent=5 // pred_fallthru
        _
      %p3479 = scmp.le.s32.totalorder 2, %s14
      // Predicated region
      $region57: #{tpu_custom_call.1} parent=5 // pred_check
        %p3480 = pneg %p3479
      $region58: #{tpu_custom_call.1} parent=5 // pred_check_branch
        %3482 = sbr.rel (%p3480) target = $region60
      $region59: #{tpu_custom_call.1} parent=5 // pred_region
        %s3483 = ssub.s32 %s14, 2
        // Predicated region
        $region61: #{tpu_custom_call.1} parent=59 // pred_check
          %p3484 = pneg %p141
        $region62: #{tpu_custom_call.1} parent=59 // pred_check_branch
          %3486 = sbr.rel (%p3484) target = $region64
        $region63: #{tpu_custom_call.1} parent=59 // pred_region
          %s3487 = sand.u32 %s126, 1
          %s3488 = scalar_lea.sflag [#allocation6], %s3487
          %s3489 = sand.u32 %s126, 1
          %s3490 = smul.addr %s3489, 256
          %s3491 = scalar_lea.vmem [#allocation5], %s3490
          %3493 = dma.done %s3488, 4096
        $region64: #{tpu_custom_call.1} parent=59 // pred_fallthru
          _
      $region60: #{tpu_custom_call.1} parent=5 // pred_fallthru
        _
    $region6: #{tpu_custom_call.1} parent=1 // loop_footer
      %s18 = sadd.s32 1, %s14
    $region7: #{tpu_custom_call.1} parent=1 // loop_footer_branch
      %13 = sbr.rel target = $region3
    $region8: #{tpu_custom_call.1} parent=1 // loop_exit
      _
    %3494 = vsyncpa [#allocation6], 1
    %s3495 = scalar_lea.sflag [#allocation6], 1
    %3496 = vsyncpa %s3495, 1
  %3497 = vsyncmov [#allocation4]
  %s3498 = vpop.sfrf %3497
  %p3499 = scmp.eq.s32.totalorder %s3498, 0
  %p3500 = pneg %p3499
  %3502 = shalt.err (%p3500)

</llo_original>
